<compile_context>
chip_gen: v7x
topology: tpu7x:2x2x1
jax: 0.10.0
libtpu: 0.0.40
codegen_flags: <defaults>
</compile_context>

<pallas_src>
import functools

import jax
import jax.numpy as jnp
from jax.experimental import pallas as pl
from jax.experimental.pallas import tpu as pltpu

BN_EPS = 1e-5
WEIGHT_DTYPE = jnp.bfloat16   # MXU input dtype (f32 accumulation kept)

# Cached capability probe: does this jax build accept pl.Buffered(1) on a
# constant-index BlockSpec (single-buffered resident weights)?
_SINGLE_BUFFER_WEIGHTS = None


def _round_up(n, m):
    return ((n + m - 1) // m) * m


def _cdiv(a, b):
    return (a + b - 1) // b


def _tpu_generation():
    """Best-effort TPU generation tag ('v5', 'v6', 'v7', ...) or None."""
    try:
        kind = jax.devices()[0].device_kind.lower()
    except Exception:
        return None
    if "v7" in kind or "7x" in kind:
        return "v7"
    for g in ("v6", "v5", "v4", "v3", "v2"):
        if g in kind:
            return g
    return None


def _vmem_capacity_bytes(gen):
    try:
        cap = int(pltpu.get_tpu_info().vmem_capacity_bytes)
        if cap > 0:
            return cap
    except Exception:
        pass
    return (64 << 20) if gen == "v7" else (128 << 20)


def _choose_tiling(b, block_b, gen):
    """Pick (batch_tile, padded_batch).

    The batch axis lands on the OUTPUT lane dimension (transposed output), so
    whenever there is more than one grid step the tile must be a multiple of
    128; with a single grid step it only needs 8-row granularity (input tile
    sublanes / full-dim blocks everywhere else).
    """
    b8 = _round_up(max(b, 1), 8)
    block_b = _round_up(max(block_b, 128), 128)
    min_tiles = 1
    # On v7x force >=2 grid steps (when each tile can still be >=128 rows) so
    # dimension_semantics=("parallel",) shards the batch across both TCs.
    if gen == "v7" and b8 >= 2 * 128:
        min_tiles = 2
    n_tiles = max(min_tiles, _cdiv(b8, block_b))
    if n_tiles == 1:
        return b8, b8
    tb = min(block_b, _round_up(_cdiv(b8, n_tiles), 128))
    padded_b = _round_up(b8, tb)
    return tb, padded_b


def _mlp_kernel(less_para, x_ref, *rest):
    """Whole MLP for one (TB, D) batch tile; output stored transposed (8, TB)."""
    *param_refs, out_ref = rest
    refs = iter(param_refs)

    def linear_relu(h):
        w_ref = next(refs)
        b_ref = next(refs)
        y = jnp.dot(h.astype(w_ref.dtype), w_ref[...],
                    preferred_element_type=jnp.float32)
        # Bias add + ReLU in the bias dtype (bf16 on v6e/v7x, f32 on v5e).
        return jnp.maximum(y.astype(b_ref.dtype) + b_ref[...], 0)

    h = x_ref[...]                         # (TB, D) bf16 (cast on host)
    h = linear_relu(h)                     # linear1 (+ folded BatchNorm) + ReLU
    if less_para == 0:                     # static Python branch, as in reference
        h = linear_relu(h)                 # linear2 + ReLU
    h = linear_relu(h)                     # linear3 + ReLU
    h = linear_relu(h)                     # linear4 + ReLU

    # dropout(p=0.5, training=False) -> identity in inference
    # TODO(synk): training-mode dropout (pltpu.prng_* Bernoulli mask) not emitted.

    # linear5 computed transposed so the store is lane-dense in BATCH:
    #   (8, D_last) . (TB, D_last)^T -> (8, TB); only row 0 is meaningful.
    w5t_ref = next(refs)
    b5t_ref = next(refs)
    y = jax.lax.dot_general(
        w5t_ref[...], h.astype(w5t_ref.dtype),
        dimension_numbers=(((1,), (1,)), ((), ())),
        preferred_element_type=jnp.float32)              # (8, TB) f32
    out_ref[...] = jax.nn.sigmoid(y + b5t_ref[...])      # MSE=True -> sigmoid


def init_params(key, input_size):
    """Deterministic parameter init matching PyTorch module shapes (f32 masters)."""
    dims = [input_size, input_size * 20, input_size * 20,
            input_size * 10, input_size, 1]
    params = {}
    keys = jax.random.split(key, 16)
    ki = 0
    for layer in range(5):
        din, dout = dims[layer], dims[layer + 1]
        bound = 1.0 / jnp.sqrt(jnp.float32(din))
        params[f"w{layer + 1}"] = jax.random.uniform(
            keys[ki], (din, dout), jnp.float32, -bound, bound); ki += 1
        params[f"b{layer + 1}"] = jax.random.uniform(
            keys[ki], (1, dout), jnp.float32, -bound, bound); ki += 1
    params["gamma"] = jnp.ones((1, input_size), jnp.float32) \
        + 0.1 * jax.random.normal(keys[ki], (1, input_size), jnp.float32); ki += 1
    params["beta"] = 0.1 * jax.random.normal(keys[ki], (1, input_size), jnp.float32); ki += 1
    params["rmean"] = 0.1 * jax.random.normal(keys[ki], (1, input_size), jnp.float32); ki += 1
    params["rvar"] = jnp.abs(
        jnp.ones((1, input_size), jnp.float32)
        + 0.1 * jax.random.normal(keys[ki], (1, input_size), jnp.float32)); ki += 1
    return params


def _prepare_params(params, less_para, act_dtype):
    """Fold BN (eval) into linear1, cast weights to bf16, transpose layer5."""
    inv_std = jax.lax.rsqrt(params["rvar"] + BN_EPS)          # (1, D)
    scale = params["gamma"] * inv_std                         # (1, D)
    shift = params["beta"] - params["rmean"] * scale          # (1, D)
    # y = (x*scale + shift) @ w1 + b1  ==  x @ (diag(scale) @ w1) + (shift @ w1 + b1)
    w1 = (scale.T * params["w1"]).astype(WEIGHT_DTYPE)        # (D, 20D)
    b1 = (params["b1"] + shift @ params["w1"]).astype(act_dtype)

    d_last = params["w5"].shape[0]
    # Final layer transposed & padded to 8 sublanes: row 0 = w5^T, rows 1..7 = 0.
    w5t = jnp.zeros((8, d_last), WEIGHT_DTYPE).at[0, :].set(
        params["w5"][:, 0].astype(WEIGHT_DTYPE))
    b5t = jnp.zeros((8, 1), jnp.float32).at[0, 0].set(params["b5"][0, 0])

    args = [w1, b1]
    if less_para == 0:
        args += [params["w2"].astype(WEIGHT_DTYPE), params["b2"].astype(act_dtype)]
    args += [params["w3"].astype(WEIGHT_DTYPE), params["b3"].astype(act_dtype),
             params["w4"].astype(WEIGHT_DTYPE), params["b4"].astype(act_dtype),
             w5t, b5t]
    return tuple(args)


def mlp_forward(x, emb_pro, less_para, params, *, block_b=512):
    """Pallas-backed inference forward. `emb_pro` is unused (matches reference
    forward()); `less_para` is a static Python int."""
    global _SINGLE_BUFFER_WEIGHTS
    del emb_pro
    less_para = int(less_para)
    b, d = x.shape

    gen = _tpu_generation()
    # bf16 elementwise (bias add / ReLU) only on v6e/v7x (v5e has no bf16 VALU).
    act_dtype = jnp.bfloat16 if gen in ("v6", "v7") else jnp.float32
    param_args = _prepare_params(params, less_para, act_dtype)

    tb, padded_b = _choose_tiling(b, block_b, gen)
    grid = (padded_b // tb,)

    # Stream the input as bf16 (halves DMA bytes; matmul accumulates in f32).
    x = x.astype(WEIGHT_DTYPE)
    if padded_b != b:
        x = jnp.pad(x, ((0, padded_b - b), (0, 0)))

    # VMEM budget: resident params (x2 worst case for pipeline buffers),
    # double-buffered streamed tiles, widest (TB, 20*D) activation temporary
    # (live twice across a layer boundary), plus headroom; clamped to a
    # generation-aware cap (v7x has 64 MiB/TC, v5e/v6e have 128 MiB).
    resident_bytes = sum(int(a.size) * a.dtype.itemsize for a in param_args)
    stream_bytes = 2 * (tb * d * x.dtype.itemsize + 8 * tb * 4)
    act_bytes = 2 * tb * (20 * d) * jnp.dtype(act_dtype).itemsize
    capacity = _vmem_capacity_bytes(gen)
    cap = min(int(capacity * 0.8), capacity - (8 << 20))
    vmem_limit = int(min(max(2 * resident_bytes + stream_bytes + act_bytes
                             + (4 << 20), 16 << 20), cap))

    def build(single_buffer_weights):
        if single_buffer_weights:
            def resident_spec(a):
                # Constant index -> never re-DMA'd; single buffer saves VMEM.
                return pl.BlockSpec(a.shape, lambda i: (0, 0),
                                    pipeline_mode=pl.Buffered(1))
        else:
            def resident_spec(a):
                return pl.BlockSpec(a.shape, lambda i: (0, 0))

        in_specs = [pl.BlockSpec((tb, d), lambda i: (i, 0))] \
            + [resident_spec(a) for a in param_args]
        # Output is lane-dense in batch: block (8, tb) of an (8, padded_b) slab.
        out_specs = pl.BlockSpec((8, tb), lambda i: (0, i))
        return pl.pallas_call(
            functools.partial(_mlp_kernel, less_para),
            out_shape=jax.ShapeDtypeStruct((8, padded_b), jnp.float32),
            grid=grid,
            in_specs=in_specs,
            out_specs=out_specs,
            compiler_params=pltpu.CompilerParams(
                dimension_semantics=("parallel",),   # megacore on v7x
                vmem_limit_bytes=vmem_limit),
        )

    if _SINGLE_BUFFER_WEIGHTS is None:
        try:
            out = build(True)(x, *param_args)
            _SINGLE_BUFFER_WEIGHTS = True
        except Exception:
            # This jax build rejects Buffered(1) on constant blocks; fall back
            # to the default double-buffered resident weights.
            _SINGLE_BUFFER_WEIGHTS = False
            out = build(False)(x, *param_args)
    else:
        out = build(_SINGLE_BUFFER_WEIGHTS)(x, *param_args)

    # Row 0 holds the real outputs (batch runs along lanes); reshape to (B, 1).
    return out[0, :b].reshape(b, 1)


def _reference_forward(x, less_para, p):
    """Pure-JAX f32 reference for sanity checking."""
    out = (x - p["rmean"]) / jnp.sqrt(p["rvar"] + BN_EPS) * p["gamma"] + p["beta"]
    out = jnp.maximum(out @ p["w1"] + p["b1"], 0.0)
    if less_para == 0:
        out = jnp.maximum(out @ p["w2"] + p["b2"], 0.0)
    out = jnp.maximum(out @ p["w3"] + p["b3"], 0.0)
    out = jnp.maximum(out @ p["w4"] + p["b4"], 0.0)
    out = out @ p["w5"] + p["b5"]
    return jax.nn.sigmoid(out)


if __name__ == "__main__":
    input_size = 16

    key = jax.random.PRNGKey(0)
    kx, ke, kp = jax.random.split(key, 3)
    params = init_params(kp, input_size)

    # Small batch (single tile, full-dim blocks) and a larger batch that
    # exercises the multi-tile, lane-dense-in-batch output path.
    for batch in (8, 600):
        kb = jax.random.fold_in(kx, batch)
        x = jax.random.normal(kb, (batch, input_size), jnp.float32)
        emb_pro = jax.random.normal(ke, (batch, input_size), jnp.float32)  # unused

        out_full = jax.block_until_ready(mlp_forward(x, emb_pro, 0, params))
        out_less = jax.block_until_ready(mlp_forward(x, emb_pro, 1, params))

        ref_full = _reference_forward(x, 0, params)
        ref_less = _reference_forward(x, 1, params)

        assert out_full.shape == (batch, 1) and out_less.shape == (batch, 1)
        # bf16 weights/activations -> loosened tolerance vs the f32 reference.
        err_full = float(jnp.max(jnp.abs(out_full - ref_full)))
        err_less = float(jnp.max(jnp.abs(out_less - ref_less)))
        assert jnp.allclose(out_full, ref_full, atol=2.5e-2, rtol=2.5e-2), err_full
        assert jnp.allclose(out_less, ref_less, atol=2.5e-2, rtol=2.5e-2), err_less

    print("KERNEL_OK")
</pallas_src>

<mosaic_0001>
module attributes {stable_mosaic.version = 11 : i64} {
  func.func @_mlp_kernel(%arg0: i32, %arg1: memref<8x16xbf16, #tpu.memory_space<vmem>>, %arg2: memref<16x320xbf16, #tpu.memory_space<vmem>>, %arg3: memref<1x320xf32, #tpu.memory_space<vmem>>, %arg4: memref<320x320xbf16, #tpu.memory_space<vmem>>, %arg5: memref<1x320xf32, #tpu.memory_space<vmem>>, %arg6: memref<320x160xbf16, #tpu.memory_space<vmem>>, %arg7: memref<1x160xf32, #tpu.memory_space<vmem>>, %arg8: memref<160x16xbf16, #tpu.memory_space<vmem>>, %arg9: memref<1x16xf32, #tpu.memory_space<vmem>>, %arg10: memref<8x16xbf16, #tpu.memory_space<vmem>>, %arg11: memref<8x1xf32, #tpu.memory_space<vmem>>, %arg12: memref<8x8xf32, #tpu.memory_space<vmem>>) attributes {dimension_semantics = [#tpu.dimension_semantics<parallel>], iteration_bounds = array<i64: 1>, scalar_prefetch = 0 : i64, scratch_operands = 0 : i64, tpu.core_type = #tpu.core_type<tc>, window_params = [{transform_indices = @transform_0, window_bounds = array<i64: 8, 16>}, {pipeline_mode = #tpu.pipeline_mode<synchronous>, transform_indices = @transform_1, window_bounds = array<i64: 16, 320>}, {pipeline_mode = #tpu.pipeline_mode<synchronous>, transform_indices = @transform_2, window_bounds = array<i64: 1, 320>}, {pipeline_mode = #tpu.pipeline_mode<synchronous>, transform_indices = @transform_3, window_bounds = array<i64: 320, 320>}, {pipeline_mode = #tpu.pipeline_mode<synchronous>, transform_indices = @transform_4, window_bounds = array<i64: 1, 320>}, {pipeline_mode = #tpu.pipeline_mode<synchronous>, transform_indices = @transform_5, window_bounds = array<i64: 320, 160>}, {pipeline_mode = #tpu.pipeline_mode<synchronous>, transform_indices = @transform_6, window_bounds = array<i64: 1, 160>}, {pipeline_mode = #tpu.pipeline_mode<synchronous>, transform_indices = @transform_7, window_bounds = array<i64: 160, 16>}, {pipeline_mode = #tpu.pipeline_mode<synchronous>, transform_indices = @transform_8, window_bounds = array<i64: 1, 16>}, {pipeline_mode = #tpu.pipeline_mode<synchronous>, transform_indices = @transform_9, window_bounds = array<i64: 8, 16>}, {pipeline_mode = #tpu.pipeline_mode<synchronous>, transform_indices = @transform_10, window_bounds = array<i64: 8, 1>}, {transform_indices = @transform_11, window_bounds = array<i64: 8, 8>}]} {
    %c0 = arith.constant 0 : index
    %c0_0 = arith.constant 0 : index
    %0 = vector.load %arg1[%c0, %c0_0] : memref<8x16xbf16, #tpu.memory_space<vmem>>, vector<8x16xbf16>
    %c0_1 = arith.constant 0 : index
    %c0_2 = arith.constant 0 : index
    %1 = vector.load %arg2[%c0_1, %c0_2] : memref<16x320xbf16, #tpu.memory_space<vmem>>, vector<16x320xbf16>
    %cst = arith.constant dense<0.000000e+00> : vector<8x320xf32>
    %2 = tpu.matmul %0, %1, %cst {dimension_numbers = #tpu.dot_dimension_numbers<[1], [0], [0], [1], [0, 0, 1, 1], [], []>} : vector<8x16xbf16>, vector<16x320xbf16>, vector<8x320xf32> -> vector<8x320xf32>
    %c0_3 = arith.constant 0 : index
    %c0_4 = arith.constant 0 : index
    %3 = vector.load %arg3[%c0_3, %c0_4] : memref<1x320xf32, #tpu.memory_space<vmem>>, vector<1x320xf32>
    %4 = vector.broadcast %3 : vector<1x320xf32> to vector<8x320xf32>
    %5 = arith.addf %2, %4 : vector<8x320xf32>
    %cst_5 = arith.constant 0.000000e+00 : f32
    %6 = vector.broadcast %cst_5 : f32 to vector<8x320xf32>
    %7 = arith.maximumf %5, %6 : vector<8x320xf32>
    %8 = arith.truncf %7 : vector<8x320xf32> to vector<8x320xbf16>
    %c0_6 = arith.constant 0 : index
    %c0_7 = arith.constant 0 : index
    %9 = vector.load %arg4[%c0_6, %c0_7] : memref<320x320xbf16, #tpu.memory_space<vmem>>, vector<320x320xbf16>
    %cst_8 = arith.constant dense<0.000000e+00> : vector<8x320xf32>
    %10 = tpu.matmul %8, %9, %cst_8 {dimension_numbers = #tpu.dot_dimension_numbers<[1], [0], [0], [1], [0, 0, 1, 1], [], []>} : vector<8x320xbf16>, vector<320x320xbf16>, vector<8x320xf32> -> vector<8x320xf32>
    %c0_9 = arith.constant 0 : index
    %c0_10 = arith.constant 0 : index
    %11 = vector.load %arg5[%c0_9, %c0_10] : memref<1x320xf32, #tpu.memory_space<vmem>>, vector<1x320xf32>
    %12 = vector.broadcast %11 : vector<1x320xf32> to vector<8x320xf32>
    %13 = arith.addf %10, %12 : vector<8x320xf32>
    %cst_11 = arith.constant 0.000000e+00 : f32
    %14 = vector.broadcast %cst_11 : f32 to vector<8x320xf32>
    %15 = arith.maximumf %13, %14 : vector<8x320xf32>
    %16 = arith.truncf %15 : vector<8x320xf32> to vector<8x320xbf16>
    %c0_12 = arith.constant 0 : index
    %c0_13 = arith.constant 0 : index
    %17 = vector.load %arg6[%c0_12, %c0_13] : memref<320x160xbf16, #tpu.memory_space<vmem>>, vector<320x160xbf16>
    %cst_14 = arith.constant dense<0.000000e+00> : vector<8x160xf32>
    %18 = tpu.matmul %16, %17, %cst_14 {dimension_numbers = #tpu.dot_dimension_numbers<[1], [0], [0], [1], [0, 0, 1, 1], [], []>} : vector<8x320xbf16>, vector<320x160xbf16>, vector<8x160xf32> -> vector<8x160xf32>
    %c0_15 = arith.constant 0 : index
    %c0_16 = arith.constant 0 : index
    %19 = vector.load %arg7[%c0_15, %c0_16] : memref<1x160xf32, #tpu.memory_space<vmem>>, vector<1x160xf32>
    %20 = vector.broadcast %19 : vector<1x160xf32> to vector<8x160xf32>
    %21 = arith.addf %18, %20 : vector<8x160xf32>
    %cst_17 = arith.constant 0.000000e+00 : f32
    %22 = vector.broadcast %cst_17 : f32 to vector<8x160xf32>
    %23 = arith.maximumf %21, %22 : vector<8x160xf32>
    %24 = arith.truncf %23 : vector<8x160xf32> to vector<8x160xbf16>
    %c0_18 = arith.constant 0 : index
    %c0_19 = arith.constant 0 : index
    %25 = vector.load %arg8[%c0_18, %c0_19] : memref<160x16xbf16, #tpu.memory_space<vmem>>, vector<160x16xbf16>
    %cst_20 = arith.constant dense<0.000000e+00> : vector<8x16xf32>
    %26 = tpu.matmul %24, %25, %cst_20 {dimension_numbers = #tpu.dot_dimension_numbers<[1], [0], [0], [1], [0, 0, 1, 1], [], []>} : vector<8x160xbf16>, vector<160x16xbf16>, vector<8x16xf32> -> vector<8x16xf32>
    %c0_21 = arith.constant 0 : index
    %c0_22 = arith.constant 0 : index
    %27 = vector.load %arg9[%c0_21, %c0_22] : memref<1x16xf32, #tpu.memory_space<vmem>>, vector<1x16xf32>
    %28 = vector.broadcast %27 : vector<1x16xf32> to vector<8x16xf32>
    %29 = arith.addf %26, %28 : vector<8x16xf32>
    %cst_23 = arith.constant 0.000000e+00 : f32
    %30 = vector.broadcast %cst_23 : f32 to vector<8x16xf32>
    %31 = arith.maximumf %29, %30 : vector<8x16xf32>
    %c0_24 = arith.constant 0 : index
    %c0_25 = arith.constant 0 : index
    %32 = vector.load %arg10[%c0_24, %c0_25] : memref<8x16xbf16, #tpu.memory_space<vmem>>, vector<8x16xbf16>
    %33 = arith.truncf %31 : vector<8x16xf32> to vector<8x16xbf16>
    %cst_26 = arith.constant dense<0.000000e+00> : vector<8x8xf32>
    %34 = tpu.matmul %32, %33, %cst_26 {dimension_numbers = #tpu.dot_dimension_numbers<[1], [1], [0], [0], [0, 0, 1, 0], [], []>} : vector<8x16xbf16>, vector<8x16xbf16>, vector<8x8xf32> -> vector<8x8xf32>
    %c0_27 = arith.constant 0 : index
    %c0_28 = arith.constant 0 : index
    %35 = vector.load %arg11[%c0_27, %c0_28] : memref<8x1xf32, #tpu.memory_space<vmem>>, vector<8x1xf32>
    %36 = vector.broadcast %35 : vector<8x1xf32> to vector<8x8xf32>
    %37 = arith.addf %34, %36 : vector<8x8xf32>
    %38 = arith.negf %37 : vector<8x8xf32>
    %39 = math.exp %38 : vector<8x8xf32>
    %cst_29 = arith.constant 1.000000e+00 : f32
    %40 = vector.broadcast %cst_29 : f32 to vector<8x8xf32>
    %41 = arith.addf %40, %39 : vector<8x8xf32>
    %42 = arith.divf %40, %41 : vector<8x8xf32>
    %c0_30 = arith.constant 0 : index
    %c0_31 = arith.constant 0 : index
    %43 = vector.load %arg12[%c0_30, %c0_31] : memref<8x8xf32, #tpu.memory_space<vmem>>, vector<8x8xf32>
    tpu.vector_store %arg12[%c0_30, %c0_31], %42 {strides = array<i32>} : memref<8x8xf32, #tpu.memory_space<vmem>>, vector<8x8xf32>,
    return
  }
  func.func @transform_0(%arg0: i32) -> (i32, i32) {
    %c0_i32 = arith.constant 0 : i32
    %c0_i32_0 = arith.constant 0 : i32
    return %arg0, %c0_i32 : i32, i32
  }
  func.func @transform_1(%arg0: i32) -> (i32, i32) {
    %c0_i32 = arith.constant 0 : i32
    %c0_i32_0 = arith.constant 0 : i32
    %c0_i32_1 = arith.constant 0 : i32
    return %c0_i32, %c0_i32_0 : i32, i32
  }
  func.func @transform_2(%arg0: i32) -> (i32, i32) {
    %c0_i32 = arith.constant 0 : i32
    %c0_i32_0 = arith.constant 0 : i32
    %c0_i32_1 = arith.constant 0 : i32
    return %c0_i32, %c0_i32_0 : i32, i32
  }
  func.func @transform_3(%arg0: i32) -> (i32, i32) {
    %c0_i32 = arith.constant 0 : i32
    %c0_i32_0 = arith.constant 0 : i32
    %c0_i32_1 = arith.constant 0 : i32
    return %c0_i32, %c0_i32_0 : i32, i32
  }
  func.func @transform_4(%arg0: i32) -> (i32, i32) {
    %c0_i32 = arith.constant 0 : i32
    %c0_i32_0 = arith.constant 0 : i32
    %c0_i32_1 = arith.constant 0 : i32
    return %c0_i32, %c0_i32_0 : i32, i32
  }
  func.func @transform_5(%arg0: i32) -> (i32, i32) {
    %c0_i32 = arith.constant 0 : i32
    %c0_i32_0 = arith.constant 0 : i32
    %c0_i32_1 = arith.constant 0 : i32
    return %c0_i32, %c0_i32_0 : i32, i32
  }
  func.func @transform_6(%arg0: i32) -> (i32, i32) {
    %c0_i32 = arith.constant 0 : i32
    %c0_i32_0 = arith.constant 0 : i32
    %c0_i32_1 = arith.constant 0 : i32
    return %c0_i32, %c0_i32_0 : i32, i32
  }
  func.func @transform_7(%arg0: i32) -> (i32, i32) {
    %c0_i32 = arith.constant 0 : i32
    %c0_i32_0 = arith.constant 0 : i32
    %c0_i32_1 = arith.constant 0 : i32
    return %c0_i32, %c0_i32_0 : i32, i32
  }
  func.func @transform_8(%arg0: i32) -> (i32, i32) {
    %c0_i32 = arith.constant 0 : i32
    %c0_i32_0 = arith.constant 0 : i32
    %c0_i32_1 = arith.constant 0 : i32
    return %c0_i32, %c0_i32_0 : i32, i32
  }
  func.func @transform_9(%arg0: i32) -> (i32, i32) {
    %c0_i32 = arith.constant 0 : i32
    %c0_i32_0 = arith.constant 0 : i32
    %c0_i32_1 = arith.constant 0 : i32
    return %c0_i32, %c0_i32_0 : i32, i32
  }
  func.func @transform_10(%arg0: i32) -> (i32, i32) {
    %c0_i32 = arith.constant 0 : i32
    %c0_i32_0 = arith.constant 0 : i32
    %c0_i32_1 = arith.constant 0 : i32
    return %c0_i32, %c0_i32_0 : i32, i32
  }
  func.func @transform_11(%arg0: i32) -> (i32, i32) {
    %c0_i32 = arith.constant 0 : i32
    %c0_i32_0 = arith.constant 0 : i32
    return %c0_i32, %arg0 : i32, i32
  }
}

module attributes {stable_mosaic.version = 11 : i64} {
  func.func @_mlp_kernel(%arg0: i32, %arg1: memref<8x16xbf16, #tpu.memory_space<vmem>>, %arg2: memref<16x320xbf16, #tpu.memory_space<vmem>>, %arg3: memref<1x320xf32, #tpu.memory_space<vmem>>, %arg4: memref<320x320xbf16, #tpu.memory_space<vmem>>, %arg5: memref<1x320xf32, #tpu.memory_space<vmem>>, %arg6: memref<320x160xbf16, #tpu.memory_space<vmem>>, %arg7: memref<1x160xf32, #tpu.memory_space<vmem>>, %arg8: memref<160x16xbf16, #tpu.memory_space<vmem>>, %arg9: memref<1x16xf32, #tpu.memory_space<vmem>>, %arg10: memref<8x16xbf16, #tpu.memory_space<vmem>>, %arg11: memref<8x1xf32, #tpu.memory_space<vmem>>, %arg12: memref<8x8xf32, #tpu.memory_space<vmem>>) attributes {dimension_semantics = [#tpu.dimension_semantics<parallel>], iteration_bounds = array<i64: 1>, scalar_prefetch = 0 : i64, scratch_operands = 0 : i64, tpu.core_type = #tpu.core_type<tc>, window_params = [{transform_indices = @transform_0, window_bounds = array<i64: 8, 16>}, {pipeline_mode = #tpu.pipeline_mode<synchronous>, transform_indices = @transform_1, window_bounds = array<i64: 16, 320>}, {pipeline_mode = #tpu.pipeline_mode<synchronous>, transform_indices = @transform_2, window_bounds = array<i64: 1, 320>}, {pipeline_mode = #tpu.pipeline_mode<synchronous>, transform_indices = @transform_3, window_bounds = array<i64: 320, 320>}, {pipeline_mode = #tpu.pipeline_mode<synchronous>, transform_indices = @transform_4, window_bounds = array<i64: 1, 320>}, {pipeline_mode = #tpu.pipeline_mode<synchronous>, transform_indices = @transform_5, window_bounds = array<i64: 320, 160>}, {pipeline_mode = #tpu.pipeline_mode<synchronous>, transform_indices = @transform_6, window_bounds = array<i64: 1, 160>}, {pipeline_mode = #tpu.pipeline_mode<synchronous>, transform_indices = @transform_7, window_bounds = array<i64: 160, 16>}, {pipeline_mode = #tpu.pipeline_mode<synchronous>, transform_indices = @transform_8, window_bounds = array<i64: 1, 16>}, {pipeline_mode = #tpu.pipeline_mode<synchronous>, transform_indices = @transform_9, window_bounds = array<i64: 8, 16>}, {pipeline_mode = #tpu.pipeline_mode<synchronous>, transform_indices = @transform_10, window_bounds = array<i64: 8, 1>}, {transform_indices = @transform_11, window_bounds = array<i64: 8, 8>}]} {
    %c0 = arith.constant 0 : index
    %c0_0 = arith.constant 0 : index
    %0 = vector.load %arg1[%c0, %c0_0] : memref<8x16xbf16, #tpu.memory_space<vmem>>, vector<8x16xbf16>
    %c0_1 = arith.constant 0 : index
    %c0_2 = arith.constant 0 : index
    %1 = vector.load %arg2[%c0_1, %c0_2] : memref<16x320xbf16, #tpu.memory_space<vmem>>, vector<16x320xbf16>
    %cst = arith.constant dense<0.000000e+00> : vector<8x320xf32>
    %2 = tpu.matmul %0, %1, %cst {dimension_numbers = #tpu.dot_dimension_numbers<[1], [0], [0], [1], [0, 0, 1, 1], [], []>} : vector<8x16xbf16>, vector<16x320xbf16>, vector<8x320xf32> -> vector<8x320xf32>
    %c0_3 = arith.constant 0 : index
    %c0_4 = arith.constant 0 : index
    %3 = vector.load %arg3[%c0_3, %c0_4] : memref<1x320xf32, #tpu.memory_space<vmem>>, vector<1x320xf32>
    %4 = vector.broadcast %3 : vector<1x320xf32> to vector<8x320xf32>
    %5 = arith.addf %2, %4 : vector<8x320xf32>
    %cst_5 = arith.constant 0.000000e+00 : f32
    %6 = vector.broadcast %cst_5 : f32 to vector<8x320xf32>
    %7 = arith.maximumf %5, %6 : vector<8x320xf32>
    %8 = arith.truncf %7 : vector<8x320xf32> to vector<8x320xbf16>
    %c0_6 = arith.constant 0 : index
    %c0_7 = arith.constant 0 : index
    %9 = vector.load %arg4[%c0_6, %c0_7] : memref<320x320xbf16, #tpu.memory_space<vmem>>, vector<320x320xbf16>
    %cst_8 = arith.constant dense<0.000000e+00> : vector<8x320xf32>
    %10 = tpu.matmul %8, %9, %cst_8 {dimension_numbers = #tpu.dot_dimension_numbers<[1], [0], [0], [1], [0, 0, 1, 1], [], []>} : vector<8x320xbf16>, vector<320x320xbf16>, vector<8x320xf32> -> vector<8x320xf32>
    %c0_9 = arith.constant 0 : index
    %c0_10 = arith.constant 0 : index
    %11 = vector.load %arg5[%c0_9, %c0_10] : memref<1x320xf32, #tpu.memory_space<vmem>>, vector<1x320xf32>
    %12 = vector.broadcast %11 : vector<1x320xf32> to vector<8x320xf32>
    %13 = arith.addf %10, %12 : vector<8x320xf32>
    %cst_11 = arith.constant 0.000000e+00 : f32
    %14 = vector.broadcast %cst_11 : f32 to vector<8x320xf32>
    %15 = arith.maximumf %13, %14 : vector<8x320xf32>
    %16 = arith.truncf %15 : vector<8x320xf32> to vector<8x320xbf16>
    %c0_12 = arith.constant 0 : index
    %c0_13 = arith.constant 0 : index
    %17 = vector.load %arg6[%c0_12, %c0_13] : memref<320x160xbf16, #tpu.memory_space<vmem>>, vector<320x160xbf16>
    %cst_14 = arith.constant dense<0.000000e+00> : vector<8x160xf32>
    %18 = tpu.matmul %16, %17, %cst_14 {dimension_numbers = #tpu.dot_dimension_numbers<[1], [0], [0], [1], [0, 0, 1, 1], [], []>} : vector<8x320xbf16>, vector<320x160xbf16>, vector<8x160xf32> -> vector<8x160xf32>
    %c0_15 = arith.constant 0 : index
    %c0_16 = arith.constant 0 : index
    %19 = vector.load %arg7[%c0_15, %c0_16] : memref<1x160xf32, #tpu.memory_space<vmem>>, vector<1x160xf32>
    %20 = vector.broadcast %19 : vector<1x160xf32> to vector<8x160xf32>
    %21 = arith.addf %18, %20 : vector<8x160xf32>
    %cst_17 = arith.constant 0.000000e+00 : f32
    %22 = vector.broadcast %cst_17 : f32 to vector<8x160xf32>
    %23 = arith.maximumf %21, %22 : vector<8x160xf32>
    %24 = arith.truncf %23 : vector<8x160xf32> to vector<8x160xbf16>
    %c0_18 = arith.constant 0 : index
    %c0_19 = arith.constant 0 : index
    %25 = vector.load %arg8[%c0_18, %c0_19] : memref<160x16xbf16, #tpu.memory_space<vmem>>, vector<160x16xbf16>
    %cst_20 = arith.constant dense<0.000000e+00> : vector<8x16xf32>
    %26 = tpu.matmul %24, %25, %cst_20 {dimension_numbers = #tpu.dot_dimension_numbers<[1], [0], [0], [1], [0, 0, 1, 1], [], []>} : vector<8x160xbf16>, vector<160x16xbf16>, vector<8x16xf32> -> vector<8x16xf32>
    %c0_21 = arith.constant 0 : index
    %c0_22 = arith.constant 0 : index
    %27 = vector.load %arg9[%c0_21, %c0_22] : memref<1x16xf32, #tpu.memory_space<vmem>>, vector<1x16xf32>
    %28 = vector.broadcast %27 : vector<1x16xf32> to vector<8x16xf32>
    %29 = arith.addf %26, %28 : vector<8x16xf32>
    %cst_23 = arith.constant 0.000000e+00 : f32
    %30 = vector.broadcast %cst_23 : f32 to vector<8x16xf32>
    %31 = arith.maximumf %29, %30 : vector<8x16xf32>
    %c0_24 = arith.constant 0 : index
    %c0_25 = arith.constant 0 : index
    %32 = vector.load %arg10[%c0_24, %c0_25] : memref<8x16xbf16, #tpu.memory_space<vmem>>, vector<8x16xbf16>
    %33 = arith.truncf %31 : vector<8x16xf32> to vector<8x16xbf16>
    %cst_26 = arith.constant dense<0.000000e+00> : vector<8x8xf32>
    %34 = tpu.matmul %32, %33, %cst_26 {dimension_numbers = #tpu.dot_dimension_numbers<[1], [1], [0], [0], [0, 0, 1, 0], [], []>} : vector<8x16xbf16>, vector<8x16xbf16>, vector<8x8xf32> -> vector<8x8xf32>
    %c0_27 = arith.constant 0 : index
    %c0_28 = arith.constant 0 : index
    %35 = vector.load %arg11[%c0_27, %c0_28] : memref<8x1xf32, #tpu.memory_space<vmem>>, vector<8x1xf32>
    %36 = vector.broadcast %35 : vector<8x1xf32> to vector<8x8xf32>
    %37 = arith.addf %34, %36 : vector<8x8xf32>
    %38 = arith.negf %37 : vector<8x8xf32>
    %39 = math.exp %38 : vector<8x8xf32>
    %cst_29 = arith.constant 1.000000e+00 : f32
    %40 = vector.broadcast %cst_29 : f32 to vector<8x8xf32>
    %41 = arith.addf %40, %39 : vector<8x8xf32>
    %42 = arith.divf %40, %41 : vector<8x8xf32>
    %c0_30 = arith.constant 0 : index
    %c0_31 = arith.constant 0 : index
    %43 = vector.load %arg12[%c0_30, %c0_31] : memref<8x8xf32, #tpu.memory_space<vmem>>, vector<8x8xf32>
    tpu.vector_store %arg12[%c0_30, %c0_31], %42 {strides = array<i32>} : memref<8x8xf32, #tpu.memory_space<vmem>>, vector<8x8xf32>,
    return
  }
  func.func @transform_0(%arg0: i32) -> (i32, i32) {
    %c0_i32 = arith.constant 0 : i32
    %c0_i32_0 = arith.constant 0 : i32
    return %arg0, %c0_i32 : i32, i32
  }
  func.func @transform_1(%arg0: i32) -> (i32, i32) {
    %c0_i32 = arith.constant 0 : i32
    %c0_i32_0 = arith.constant 0 : i32
    %c0_i32_1 = arith.constant 0 : i32
    return %c0_i32, %c0_i32_0 : i32, i32
  }
  func.func @transform_2(%arg0: i32) -> (i32, i32) {
    %c0_i32 = arith.constant 0 : i32
    %c0_i32_0 = arith.constant 0 : i32
    %c0_i32_1 = arith.constant 0 : i32
    return %c0_i32, %c0_i32_0 : i32, i32
  }
  func.func @transform_3(%arg0: i32) -> (i32, i32) {
    %c0_i32 = arith.constant 0 : i32
    %c0_i32_0 = arith.constant 0 : i32
    %c0_i32_1 = arith.constant 0 : i32
    return %c0_i32, %c0_i32_0 : i32, i32
  }
  func.func @transform_4(%arg0: i32) -> (i32, i32) {
    %c0_i32 = arith.constant 0 : i32
    %c0_i32_0 = arith.constant 0 : i32
    %c0_i32_1 = arith.constant 0 : i32
    return %c0_i32, %c0_i32_0 : i32, i32
  }
  func.func @transform_5(%arg0: i32) -> (i32, i32) {
    %c0_i32 = arith.constant 0 : i32
    %c0_i32_0 = arith.constant 0 : i32
    %c0_i32_1 = arith.constant 0 : i32
    return %c0_i32, %c0_i32_0 : i32, i32
  }
  func.func @transform_6(%arg0: i32) -> (i32, i32) {
    %c0_i32 = arith.constant 0 : i32
    %c0_i32_0 = arith.constant 0 : i32
    %c0_i32_1 = arith.constant 0 : i32
    return %c0_i32, %c0_i32_0 : i32, i32
  }
  func.func @transform_7(%arg0: i32) -> (i32, i32) {
    %c0_i32 = arith.constant 0 : i32
    %c0_i32_0 = arith.constant 0 : i32
    %c0_i32_1 = arith.constant 0 : i32
    return %c0_i32, %c0_i32_0 : i32, i32
  }
  func.func @transform_8(%arg0: i32) -> (i32, i32) {
    %c0_i32 = arith.constant 0 : i32
    %c0_i32_0 = arith.constant 0 : i32
    %c0_i32_1 = arith.constant 0 : i32
    return %c0_i32, %c0_i32_0 : i32, i32
  }
  func.func @transform_9(%arg0: i32) -> (i32, i32) {
    %c0_i32 = arith.constant 0 : i32
    %c0_i32_0 = arith.constant 0 : i32
    %c0_i32_1 = arith.constant 0 : i32
    return %c0_i32, %c0_i32_0 : i32, i32
  }
  func.func @transform_10(%arg0: i32) -> (i32, i32) {
    %c0_i32 = arith.constant 0 : i32
    %c0_i32_0 = arith.constant 0 : i32
    %c0_i32_1 = arith.constant 0 : i32
    return %c0_i32, %c0_i32_0 : i32, i32
  }
  func.func @transform_11(%arg0: i32) -> (i32, i32) {
    %c0_i32 = arith.constant 0 : i32
    %c0_i32_0 = arith.constant 0 : i32
    return %c0_i32, %arg0 : i32, i32
  }
}

</mosaic_0001>

<llo_original>
// kernel: tpu_custom_call.1
$region0: #{tpu_custom_call.1}
  #allocation0 [shape = 'u32[]', space=smem, size = 0x4, offset = 0x4, fixed_abs, tag = 'smem constant byte address 0x4 - core index']
  #allocation1 [shape = 'u32[144,128]{1,0:T(1,128)}', space=vmem, size = 0x12000, scoped, tag = 'internal scratch']
  %s0 = inlined_call_operand.vmem [shape: bf16[8,16], index: 0, kind: input, shape index: {}]
  %s1 = inlined_call_operand.vmem [shape: bf16[16,320], index: 1, kind: input, shape index: {}]
  %s2 = inlined_call_operand.vmem [shape: f32[1,320], index: 2, kind: input, shape index: {}]
  %s3 = inlined_call_operand.vmem [shape: bf16[320,320], index: 3, kind: input, shape index: {}]
  %s4 = inlined_call_operand.vmem [shape: f32[1,320], index: 4, kind: input, shape index: {}]
  %s5 = inlined_call_operand.vmem [shape: bf16[320,160], index: 5, kind: input, shape index: {}]
  %s6 = inlined_call_operand.vmem [shape: f32[1,160], index: 6, kind: input, shape index: {}]
  %s7 = inlined_call_operand.vmem [shape: bf16[160,16], index: 7, kind: input, shape index: {}]
  %s8 = inlined_call_operand.vmem [shape: f32[1,16], index: 8, kind: input, shape index: {}]
  %s9 = inlined_call_operand.vmem [shape: bf16[8,16], index: 9, kind: input, shape index: {}]
  %s10 = inlined_call_operand.vmem [shape: f32[8,1], index: 10, kind: input, shape index: {}]
  %s11 = inlined_call_operand.hbm [shape: f32[8,8], index: 11, kind: output, shape index: {}]
  %s12 = sld [smem:[#allocation0]]
  $region54: #{tpu_custom_call.1} parent=0
    _
  %s14 = ssub.s32 1, %s12
  %s15 = scalar_select 0, %s14, %s12
  $region1: #{tpu_custom_call.1} parent=0
    #allocation2 [shape = 'u8[4096]{0}', space=vmem, size = 0x1000, scoped, tag = 'output window, operand 0, single buffered']
    #allocation3 [shape = 's32[1]{0}', space=sflag, size = 0x4, scoped, tag = 'scoped memory for tpu_custom_call.1']
    %16 = vsyncpa [#allocation3], 0
    // Predicated region
    $region2: #{tpu_custom_call.1} parent=1 // pred_check
      _
    $region3: #{tpu_custom_call.1} parent=1 // pred_check_branch
      %18 = sbr.rel (0) target = $region5
    $region4: #{tpu_custom_call.1} parent=1 // pred_region
      _
    $region5: #{tpu_custom_call.1} parent=1 // pred_fallthru
      _
    // Predicated region
    $region6: #{tpu_custom_call.1} parent=1 // pred_check
      _
    $region7: #{tpu_custom_call.1} parent=1 // pred_check_branch
      %20 = sbr.rel (0) target = $region9
    $region8: #{tpu_custom_call.1} parent=1 // pred_region
      _
    $region9: #{tpu_custom_call.1} parent=1 // pred_fallthru
      _
    // Predicated region
    $region10: #{tpu_custom_call.1} parent=1 // pred_check
      _
    $region11: #{tpu_custom_call.1} parent=1 // pred_check_branch
      %22 = sbr.rel (0) target = $region13
    $region12: #{tpu_custom_call.1} parent=1 // pred_region
      _
    $region13: #{tpu_custom_call.1} parent=1 // pred_fallthru
      _
    // Predicated region
    $region14: #{tpu_custom_call.1} parent=1 // pred_check
      _
    $region15: #{tpu_custom_call.1} parent=1 // pred_check_branch
      %24 = sbr.rel (0) target = $region17
    $region16: #{tpu_custom_call.1} parent=1 // pred_region
      _
    $region17: #{tpu_custom_call.1} parent=1 // pred_fallthru
      _
    // Predicated region
    $region18: #{tpu_custom_call.1} parent=1 // pred_check
      _
    $region19: #{tpu_custom_call.1} parent=1 // pred_check_branch
      %26 = sbr.rel (0) target = $region21
    $region20: #{tpu_custom_call.1} parent=1 // pred_region
      _
    $region21: #{tpu_custom_call.1} parent=1 // pred_fallthru
      _
    // Predicated region
    $region22: #{tpu_custom_call.1} parent=1 // pred_check
      _
    $region23: #{tpu_custom_call.1} parent=1 // pred_check_branch
      %28 = sbr.rel (0) target = $region25
    $region24: #{tpu_custom_call.1} parent=1 // pred_region
      _
    $region25: #{tpu_custom_call.1} parent=1 // pred_fallthru
      _
    // Predicated region
    $region26: #{tpu_custom_call.1} parent=1 // pred_check
      _
    $region27: #{tpu_custom_call.1} parent=1 // pred_check_branch
      %30 = sbr.rel (0) target = $region29
    $region28: #{tpu_custom_call.1} parent=1 // pred_region
      _
    $region29: #{tpu_custom_call.1} parent=1 // pred_fallthru
      _
    // Predicated region
    $region30: #{tpu_custom_call.1} parent=1 // pred_check
      _
    $region31: #{tpu_custom_call.1} parent=1 // pred_check_branch
      %32 = sbr.rel (0) target = $region33
    $region32: #{tpu_custom_call.1} parent=1 // pred_region
      _
    $region33: #{tpu_custom_call.1} parent=1 // pred_fallthru
      _
    // Predicated region
    $region34: #{tpu_custom_call.1} parent=1 // pred_check
      _
    $region35: #{tpu_custom_call.1} parent=1 // pred_check_branch
      %34 = sbr.rel (0) target = $region37
    $region36: #{tpu_custom_call.1} parent=1 // pred_region
      _
    $region37: #{tpu_custom_call.1} parent=1 // pred_fallthru
      _
    // Predicated region
    $region38: #{tpu_custom_call.1} parent=1 // pred_check
      _
    $region39: #{tpu_custom_call.1} parent=1 // pred_check_branch
      %36 = sbr.rel (0) target = $region41
    $region40: #{tpu_custom_call.1} parent=1 // pred_region
      _
    $region41: #{tpu_custom_call.1} parent=1 // pred_fallthru
      _
    // Predicated region
    $region42: #{tpu_custom_call.1} parent=1 // pred_check
      _
    $region43: #{tpu_custom_call.1} parent=1 // pred_check_branch
      %38 = sbr.rel (0) target = $region45
    $region44: #{tpu_custom_call.1} parent=1 // pred_region
      _
    $region45: #{tpu_custom_call.1} parent=1 // pred_fallthru
      _
    %v40 = vld [vmem:[%s0] sm:$0xf]
    %v41 = vld [vmem:[%s1] sm:$0xff]
    %v42 = vld [vmem:[%s1 + $0x8] sm:$0xf]
    %v43 = vld [vmem:[%s1 + $0xc] sm:$0xff]
    %v44 = vld [vmem:[%s1 + $0x14] sm:$0xf]
    %v45 = vld [vmem:[%s2] sm:$0x7]
    %v47 = vlaneseq
    %v48 = vshrl.u32 %v47, 7
    %v49 = vsub.s32 0, %v48
    %v50 = vrot.slane %v45, %v49
    %v51 = vlaneseq
    %v52 = vshrl.u32 %v51, 7
    %v53 = vsub.s32 1, %v52
    %v54 = vrot.slane %v45, %v53
    %v55 = vlaneseq
    %v56 = vshrl.u32 %v55, 7
    %v57 = vsub.s32 2, %v56
    %v58 = vrot.slane %v45, %v57
    %v66 = vunpack.c.l.b16 %v41
    %v67 = vunpack.c.h.b16 %v41
    %v68 = vunpack.c.l.b16 %v42
    %v69 = vunpack.c.l.b16 %v43
    %v70 = vunpack.c.h.b16 %v43
    %v71 = vunpack.c.l.b16 %v44
    %v72 = vpack.c.b16 %v69, %v66
    %v73 = vpack.c.b16 %v70, %v67
    %v74 = vpack.c.b16 %v71, %v68
    %vm78 = vcmask 130048
    %v80 = vsel %vm78, %v40, 0
    %82 = vmatprep.subr.bf16.mxu0 %v73
    %83 = vmatpush1.bf16.msra.mxu0 %v72
    %84 = vmatprep.subr.bf16.mxu0 0
    %85 = vmatpush1.bf16.msra.mxu0 0
    %86 = vmatprep.subr.bf16.mxu0 0
    %87 = vmatpush1.bf16.msra.mxu0 0
    %88 = vmatprep.subr.bf16.mxu0 0
    %89 = vmatpush1.bf16.msra.mxu0 0
    %90 = vmatprep.subr.bf16.mxu0 0
    %91 = vmatpush1.bf16.msra.mxu0 0
    %92 = vmatprep.subr.bf16.mxu0 0
    %93 = vmatpush1.bf16.msra.mxu0 0
    %94 = vmatprep.subr.bf16.mxu0 0
    %95 = vmatpush1.bf16.msra.mxu0 0
    %96 = vmatprep.subr.bf16.mxu0 0
    %97 = vmatpush1.bf16.msra.mxu0 0
    %98 = vmatprep.subr.bf16.mxu0 0
    %99 = vmatpush1.bf16.msra.mxu0 0
    %100 = vmatprep.subr.bf16.mxu0 0
    %101 = vmatpush1.bf16.msra.mxu0 0
    %102 = vmatprep.subr.bf16.mxu0 0
    %103 = vmatpush1.bf16.msra.mxu0 0
    %104 = vmatprep.subr.bf16.mxu0 0
    %105 = vmatpush1.bf16.msra.mxu0 0
    %106 = vmatprep.subr.bf16.mxu0 0
    %107 = vmatpush1.bf16.msra.mxu0 0
    %108 = vmatprep.subr.bf16.mxu0 0
    %109 = vmatpush1.bf16.msra.mxu0 0
    %110 = vmatprep.subr.bf16.mxu0 0
    %111 = vmatpush1.bf16.msra.mxu0 0
    %112 = vmatprep.subr.bf16.mxu0 0
    %113 = vmatpush1.bf16.msra.mxu0 0
    %114 = vmatprep.mubr.bf16.mxu0 0
    %115 = vmatmul.mubr.bf16.gmra.mrb[0].mxu0 %v80
    %v116 = vpop.f32.mrb[0].mxu0
    %v117 = vadd.f32 %v50, %v116
    %v118 = vpop.f32.mrb[0].mxu0
    %v119 = vadd.f32 %v54, %v118
    %v120 = vpop.f32.mrb[0].mxu0
    %v121 = vpop.f32.mrb[0].mxu0
    %122 = vdwg.mxu0
    %123 = vmatprep.subr.bf16.mxu0 0
    %124 = vmatpush1.bf16.msra.mxu0 %v74
    %125 = vmatprep.subr.bf16.mxu0 0
    %126 = vmatpush1.bf16.msra.mxu0 0
    %127 = vmatprep.subr.bf16.mxu0 0
    %128 = vmatpush1.bf16.msra.mxu0 0
    %129 = vmatprep.subr.bf16.mxu0 0
    %130 = vmatpush1.bf16.msra.mxu0 0
    %131 = vmatprep.subr.bf16.mxu0 0
    %132 = vmatpush1.bf16.msra.mxu0 0
    %133 = vmatprep.subr.bf16.mxu0 0
    %134 = vmatpush1.bf16.msra.mxu0 0
    %135 = vmatprep.subr.bf16.mxu0 0
    %136 = vmatpush1.bf16.msra.mxu0 0
    %137 = vmatprep.subr.bf16.mxu0 0
    %138 = vmatpush1.bf16.msra.mxu0 0
    %139 = vmatprep.subr.bf16.mxu0 0
    %140 = vmatpush1.bf16.msra.mxu0 0
    %141 = vmatprep.subr.bf16.mxu0 0
    %142 = vmatpush1.bf16.msra.mxu0 0
    %143 = vmatprep.subr.bf16.mxu0 0
    %144 = vmatpush1.bf16.msra.mxu0 0
    %145 = vmatprep.subr.bf16.mxu0 0
    %146 = vmatpush1.bf16.msra.mxu0 0
    %147 = vmatprep.subr.bf16.mxu0 0
    %148 = vmatpush1.bf16.msra.mxu0 0
    %149 = vmatprep.subr.bf16.mxu0 0
    %150 = vmatpush1.bf16.msra.mxu0 0
    %151 = vmatprep.subr.bf16.mxu0 0
    %152 = vmatpush1.bf16.msra.mxu0 0
    %153 = vmatprep.subr.bf16.mxu0 0
    %154 = vmatpush1.bf16.msra.mxu0 0
    %155 = vmatprep.mubr.bf16.mxu0 0
    %156 = vmatmul.mubr.bf16.gmra.mrb[0].mxu0 %v80
    %v157 = vpop.f32.mrb[0].mxu0
    %v158 = vadd.f32 %v58, %v157
    %v159 = vpop.f32.mrb[0].mxu0
    %v160 = vpop.f32.mrb[0].mxu0
    %v161 = vpop.f32.mrb[0].mxu0
    %162 = vdwg.mxu0
    %v163 = vmax.f32 %v117, 0.0
    %v164 = vmax.f32 %v119, 0.0
    %v165 = vmax.f32 %v158, 0.0
    %v166 = vpack.c.bf16 %v163, %v163
    %v167 = vpack.c.bf16 %v164, %v164
    %v168 = vpack.c.bf16 %v165, %v165
    %v169 = vld [vmem:[%s3] sm:$0xff]
    %v170 = vld [vmem:[%s3 + $0x8] sm:$0xf]
    %v171 = vld [vmem:[%s3 + $0xc] sm:$0xff]
    %v172 = vld [vmem:[%s3 + $0x14] sm:$0xf]
    %v173 = vld [vmem:[%s3 + $0x18] sm:$0xff]
    %v174 = vld [vmem:[%s3 + $0x20] sm:$0xf]
    %v175 = vld [vmem:[%s3 + $0x24] sm:$0xff]
    %v176 = vld [vmem:[%s3 + $0x2c] sm:$0xf]
    %v177 = vld [vmem:[%s3 + $0x30] sm:$0xff]
    %v178 = vld [vmem:[%s3 + $0x38] sm:$0xf]
    %v179 = vld [vmem:[%s3 + $0x3c] sm:$0xff]
    %v180 = vld [vmem:[%s3 + $0x44] sm:$0xf]
    %v181 = vld [vmem:[%s3 + $0x48] sm:$0xff]
    %v182 = vld [vmem:[%s3 + $0x50] sm:$0xf]
    %v183 = vld [vmem:[%s3 + $0x54] sm:$0xff]
    %v184 = vld [vmem:[%s3 + $0x5c] sm:$0xf]
    %v185 = vld [vmem:[%s3 + $0x60] sm:$0xff]
    %v186 = vld [vmem:[%s3 + $0x68] sm:$0xf]
    %v187 = vld [vmem:[%s3 + $0x6c] sm:$0xff]
    %v188 = vld [vmem:[%s3 + $0x74] sm:$0xf]
    %v189 = vld [vmem:[%s3 + $0x78] sm:$0xff]
    %v190 = vld [vmem:[%s3 + $0x80] sm:$0xf]
    %v191 = vld [vmem:[%s3 + $0x84] sm:$0xff]
    %v192 = vld [vmem:[%s3 + $0x8c] sm:$0xf]
    %v193 = vld [vmem:[%s3 + $0x90] sm:$0xff]
    %v194 = vld [vmem:[%s3 + $0x98] sm:$0xf]
    %v195 = vld [vmem:[%s3 + $0x9c] sm:$0xff]
    %v196 = vld [vmem:[%s3 + $0xa4] sm:$0xf]
    %v197 = vld [vmem:[%s3 + $0xa8] sm:$0xff]
    %v198 = vld [vmem:[%s3 + $0xb0] sm:$0xf]
    %v199 = vld [vmem:[%s3 + $0xb4] sm:$0xff]
    %v200 = vld [vmem:[%s3 + $0xbc] sm:$0xf]
    %v201 = vld [vmem:[%s3 + $0xc0] sm:$0xff]
    %v202 = vld [vmem:[%s3 + $0xc8] sm:$0xf]
    %v203 = vld [vmem:[%s3 + $0xcc] sm:$0xff]
    %v204 = vld [vmem:[%s3 + $0xd4] sm:$0xf]
    %v205 = vld [vmem:[%s3 + $0xd8] sm:$0xff]
    %v206 = vld [vmem:[%s3 + $0xe0] sm:$0xf]
    %v207 = vld [vmem:[%s3 + $0xe4] sm:$0xff]
    %v208 = vld [vmem:[%s3 + $0xec] sm:$0xf]
    %v209 = vld [vmem:[%s3 + $0xf0] sm:$0xff]
    %v210 = vld [vmem:[%s3 + $0xf8] sm:$0xf]
    %v211 = vld [vmem:[%s3 + $0xfc] sm:$0xff]
    %v212 = vld [vmem:[%s3 + $0x104] sm:$0xf]
    %v213 = vld [vmem:[%s3 + $0x108] sm:$0xff]
    %v214 = vld [vmem:[%s3 + $0x110] sm:$0xf]
    %v215 = vld [vmem:[%s3 + $0x114] sm:$0xff]
    %v216 = vld [vmem:[%s3 + $0x11c] sm:$0xf]
    %v217 = vld [vmem:[%s3 + $0x120] sm:$0xff]
    %v218 = vld [vmem:[%s3 + $0x128] sm:$0xf]
    %v219 = vld [vmem:[%s3 + $0x12c] sm:$0xff]
    %v220 = vld [vmem:[%s3 + $0x134] sm:$0xf]
    %v221 = vld [vmem:[%s3 + $0x138] sm:$0xff]
    %v222 = vld [vmem:[%s3 + $0x140] sm:$0xf]
    %v223 = vld [vmem:[%s3 + $0x144] sm:$0xff]
    %v224 = vld [vmem:[%s3 + $0x14c] sm:$0xf]
    %v225 = vld [vmem:[%s3 + $0x150] sm:$0xff]
    %v226 = vld [vmem:[%s3 + $0x158] sm:$0xf]
    %v227 = vld [vmem:[%s3 + $0x15c] sm:$0xff]
    %v228 = vld [vmem:[%s3 + $0x164] sm:$0xf]
    %v229 = vld [vmem:[%s3 + $0x168] sm:$0xff]
    %v230 = vld [vmem:[%s3 + $0x170] sm:$0xf]
    %v231 = vld [vmem:[%s3 + $0x174] sm:$0xff]
    %v232 = vld [vmem:[%s3 + $0x17c] sm:$0xf]
    %v233 = vld [vmem:[%s3 + $0x180] sm:$0xff]
    %v234 = vld [vmem:[%s3 + $0x188] sm:$0xf]
    %v235 = vld [vmem:[%s3 + $0x18c] sm:$0xff]
    %v236 = vld [vmem:[%s3 + $0x194] sm:$0xf]
    %v237 = vld [vmem:[%s3 + $0x198] sm:$0xff]
    %v238 = vld [vmem:[%s3 + $0x1a0] sm:$0xf]
    %v239 = vld [vmem:[%s3 + $0x1a4] sm:$0xff]
    %v240 = vld [vmem:[%s3 + $0x1ac] sm:$0xf]
    %v241 = vld [vmem:[%s3 + $0x1b0] sm:$0xff]
    %v242 = vld [vmem:[%s3 + $0x1b8] sm:$0xf]
    %v243 = vld [vmem:[%s3 + $0x1bc] sm:$0xff]
    %v244 = vld [vmem:[%s3 + $0x1c4] sm:$0xf]
    %v245 = vld [vmem:[%s3 + $0x1c8] sm:$0xff]
    %v246 = vld [vmem:[%s3 + $0x1d0] sm:$0xf]
    %v247 = vld [vmem:[%s3 + $0x1d4] sm:$0xff]
    %v248 = vld [vmem:[%s3 + $0x1dc] sm:$0xf]
    %v249 = vld [vmem:[%s4] sm:$0x7]
    %v251 = vlaneseq
    %v252 = vshrl.u32 %v251, 7
    %v253 = vsub.s32 0, %v252
    %v254 = vrot.slane %v249, %v253
    %v255 = vlaneseq
    %v256 = vshrl.u32 %v255, 7
    %v257 = vsub.s32 1, %v256
    %v258 = vrot.slane %v249, %v257
    %v259 = vlaneseq
    %v260 = vshrl.u32 %v259, 7
    %v261 = vsub.s32 2, %v260
    %v262 = vrot.slane %v249, %v261
    %v346 = vunpack.c.l.b16 %v169
    %v347 = vunpack.c.h.b16 %v169
    %v348 = vunpack.c.l.b16 %v170
    %v349 = vunpack.c.l.b16 %v171
    %v350 = vunpack.c.h.b16 %v171
    %v351 = vunpack.c.l.b16 %v172
    %v352 = vunpack.c.l.b16 %v173
    %v353 = vunpack.c.h.b16 %v173
    %v354 = vunpack.c.l.b16 %v174
    %v355 = vunpack.c.l.b16 %v175
    %v356 = vunpack.c.h.b16 %v175
    %v357 = vunpack.c.l.b16 %v176
    %v358 = vunpack.c.l.b16 %v177
    %v359 = vunpack.c.h.b16 %v177
    %v360 = vunpack.c.l.b16 %v178
    %v361 = vunpack.c.l.b16 %v179
    %v362 = vunpack.c.h.b16 %v179
    %v363 = vunpack.c.l.b16 %v180
    %v364 = vunpack.c.l.b16 %v181
    %v365 = vunpack.c.h.b16 %v181
    %v366 = vunpack.c.l.b16 %v182
    %v367 = vunpack.c.l.b16 %v183
    %v368 = vunpack.c.h.b16 %v183
    %v369 = vunpack.c.l.b16 %v184
    %v370 = vunpack.c.l.b16 %v185
    %v371 = vunpack.c.h.b16 %v185
    %v372 = vunpack.c.l.b16 %v186
    %v373 = vunpack.c.l.b16 %v187
    %v374 = vunpack.c.h.b16 %v187
    %v375 = vunpack.c.l.b16 %v188
    %v376 = vunpack.c.l.b16 %v189
    %v377 = vunpack.c.h.b16 %v189
    %v378 = vunpack.c.l.b16 %v190
    %v379 = vunpack.c.l.b16 %v191
    %v380 = vunpack.c.h.b16 %v191
    %v381 = vunpack.c.l.b16 %v192
    %v382 = vunpack.c.l.b16 %v193
    %v383 = vunpack.c.h.b16 %v193
    %v384 = vunpack.c.l.b16 %v194
    %v385 = vunpack.c.l.b16 %v195
    %v386 = vunpack.c.h.b16 %v195
    %v387 = vunpack.c.l.b16 %v196
    %v388 = vunpack.c.l.b16 %v197
    %v389 = vunpack.c.h.b16 %v197
    %v390 = vunpack.c.l.b16 %v198
    %v391 = vunpack.c.l.b16 %v199
    %v392 = vunpack.c.h.b16 %v199
    %v393 = vunpack.c.l.b16 %v200
    %v394 = vunpack.c.l.b16 %v201
    %v395 = vunpack.c.h.b16 %v201
    %v396 = vunpack.c.l.b16 %v202
    %v397 = vunpack.c.l.b16 %v203
    %v398 = vunpack.c.h.b16 %v203
    %v399 = vunpack.c.l.b16 %v204
    %v400 = vunpack.c.l.b16 %v205
    %v401 = vunpack.c.h.b16 %v205
    %v402 = vunpack.c.l.b16 %v206
    %v403 = vunpack.c.l.b16 %v207
    %v404 = vunpack.c.h.b16 %v207
    %v405 = vunpack.c.l.b16 %v208
    %v406 = vunpack.c.l.b16 %v209
    %v407 = vunpack.c.h.b16 %v209
    %v408 = vunpack.c.l.b16 %v210
    %v409 = vunpack.c.l.b16 %v211
    %v410 = vunpack.c.h.b16 %v211
    %v411 = vunpack.c.l.b16 %v212
    %v412 = vunpack.c.l.b16 %v213
    %v413 = vunpack.c.h.b16 %v213
    %v414 = vunpack.c.l.b16 %v214
    %v415 = vunpack.c.l.b16 %v215
    %v416 = vunpack.c.h.b16 %v215
    %v417 = vunpack.c.l.b16 %v216
    %v418 = vunpack.c.l.b16 %v217
    %v419 = vunpack.c.h.b16 %v217
    %v420 = vunpack.c.l.b16 %v218
    %v421 = vunpack.c.l.b16 %v219
    %v422 = vunpack.c.h.b16 %v219
    %v423 = vunpack.c.l.b16 %v220
    %v424 = vunpack.c.l.b16 %v221
    %v425 = vunpack.c.h.b16 %v221
    %v426 = vunpack.c.l.b16 %v222
    %v427 = vunpack.c.l.b16 %v223
    %v428 = vunpack.c.h.b16 %v223
    %v429 = vunpack.c.l.b16 %v224
    %v430 = vunpack.c.l.b16 %v225
    %v431 = vunpack.c.h.b16 %v225
    %v432 = vunpack.c.l.b16 %v226
    %v433 = vunpack.c.l.b16 %v227
    %v434 = vunpack.c.h.b16 %v227
    %v435 = vunpack.c.l.b16 %v228
    %v436 = vunpack.c.l.b16 %v229
    %v437 = vunpack.c.h.b16 %v229
    %v438 = vunpack.c.l.b16 %v230
    %v439 = vunpack.c.l.b16 %v231
    %v440 = vunpack.c.h.b16 %v231
    %v441 = vunpack.c.l.b16 %v232
    %v442 = vunpack.c.l.b16 %v233
    %v443 = vunpack.c.h.b16 %v233
    %v444 = vunpack.c.l.b16 %v234
    %v445 = vunpack.c.l.b16 %v235
    %v446 = vunpack.c.h.b16 %v235
    %v447 = vunpack.c.l.b16 %v236
    %v448 = vunpack.c.l.b16 %v237
    %v449 = vunpack.c.h.b16 %v237
    %v450 = vunpack.c.l.b16 %v238
    %v451 = vunpack.c.l.b16 %v239
    %v452 = vunpack.c.h.b16 %v239
    %v453 = vunpack.c.l.b16 %v240
    %v454 = vunpack.c.l.b16 %v241
    %v455 = vunpack.c.h.b16 %v241
    %v456 = vunpack.c.l.b16 %v242
    %v457 = vunpack.c.l.b16 %v243
    %v458 = vunpack.c.h.b16 %v243
    %v459 = vunpack.c.l.b16 %v244
    %v460 = vunpack.c.l.b16 %v245
    %v461 = vunpack.c.h.b16 %v245
    %v462 = vunpack.c.l.b16 %v246
    %v463 = vunpack.c.l.b16 %v247
    %v464 = vunpack.c.h.b16 %v247
    %v465 = vunpack.c.l.b16 %v248
    %v466 = vpack.c.b16 %v349, %v346
    %v467 = vpack.c.b16 %v350, %v347
    %v468 = vpack.c.b16 %v351, %v348
    %v469 = vpack.c.b16 %v355, %v352
    %v470 = vpack.c.b16 %v356, %v353
    %v471 = vpack.c.b16 %v357, %v354
    %v472 = vpack.c.b16 %v361, %v358
    %v473 = vpack.c.b16 %v362, %v359
    %v474 = vpack.c.b16 %v363, %v360
    %v475 = vpack.c.b16 %v367, %v364
    %v476 = vpack.c.b16 %v368, %v365
    %v477 = vpack.c.b16 %v369, %v366
    %v478 = vpack.c.b16 %v373, %v370
    %v479 = vpack.c.b16 %v374, %v371
    %v480 = vpack.c.b16 %v375, %v372
    %v481 = vpack.c.b16 %v379, %v376
    %v482 = vpack.c.b16 %v380, %v377
    %v483 = vpack.c.b16 %v381, %v378
    %v484 = vpack.c.b16 %v385, %v382
    %v485 = vpack.c.b16 %v386, %v383
    %v486 = vpack.c.b16 %v387, %v384
    %v487 = vpack.c.b16 %v391, %v388
    %v488 = vpack.c.b16 %v392, %v389
    %v489 = vpack.c.b16 %v393, %v390
    %v490 = vpack.c.b16 %v397, %v394
    %v491 = vpack.c.b16 %v398, %v395
    %v492 = vpack.c.b16 %v399, %v396
    %v493 = vpack.c.b16 %v403, %v400
    %v494 = vpack.c.b16 %v404, %v401
    %v495 = vpack.c.b16 %v405, %v402
    %v496 = vpack.c.b16 %v409, %v406
    %v497 = vpack.c.b16 %v410, %v407
    %v498 = vpack.c.b16 %v411, %v408
    %v499 = vpack.c.b16 %v415, %v412
    %v500 = vpack.c.b16 %v416, %v413
    %v501 = vpack.c.b16 %v417, %v414
    %v502 = vpack.c.b16 %v421, %v418
    %v503 = vpack.c.b16 %v422, %v419
    %v504 = vpack.c.b16 %v423, %v420
    %v505 = vpack.c.b16 %v427, %v424
    %v506 = vpack.c.b16 %v428, %v425
    %v507 = vpack.c.b16 %v429, %v426
    %v508 = vpack.c.b16 %v433, %v430
    %v509 = vpack.c.b16 %v434, %v431
    %v510 = vpack.c.b16 %v435, %v432
    %v511 = vpack.c.b16 %v439, %v436
    %v512 = vpack.c.b16 %v440, %v437
    %v513 = vpack.c.b16 %v441, %v438
    %v514 = vpack.c.b16 %v445, %v442
    %v515 = vpack.c.b16 %v446, %v443
    %v516 = vpack.c.b16 %v447, %v444
    %v517 = vpack.c.b16 %v451, %v448
    %v518 = vpack.c.b16 %v452, %v449
    %v519 = vpack.c.b16 %v453, %v450
    %v520 = vpack.c.b16 %v457, %v454
    %v521 = vpack.c.b16 %v458, %v455
    %v522 = vpack.c.b16 %v459, %v456
    %v523 = vpack.c.b16 %v463, %v460
    %v524 = vpack.c.b16 %v464, %v461
    %v525 = vpack.c.b16 %v465, %v462
    %vm586 = vcmask 523264
    %v588 = vsel %vm586, %v168, 0
    %590 = vmatprep.subr.bf16.mxu0 %v467
    %591 = vmatpush1.bf16.msra.mxu0 %v466
    %592 = vmatprep.subr.bf16.mxu0 %v470
    %593 = vmatpush1.bf16.msra.mxu0 %v469
    %594 = vmatprep.subr.bf16.mxu0 %v473
    %595 = vmatpush1.bf16.msra.mxu0 %v472
    %596 = vmatprep.subr.bf16.mxu0 %v476
    %597 = vmatpush1.bf16.msra.mxu0 %v475
    %598 = vmatprep.subr.bf16.mxu0 %v479
    %599 = vmatpush1.bf16.msra.mxu0 %v478
    %600 = vmatprep.subr.bf16.mxu0 %v482
    %601 = vmatpush1.bf16.msra.mxu0 %v481
    %602 = vmatprep.subr.bf16.mxu0 %v485
    %603 = vmatpush1.bf16.msra.mxu0 %v484
    %604 = vmatprep.subr.bf16.mxu0 %v488
    %605 = vmatpush1.bf16.msra.mxu0 %v487
    %606 = vmatprep.subr.bf16.mxu0 %v491
    %607 = vmatpush1.bf16.msra.mxu0 %v490
    %608 = vmatprep.subr.bf16.mxu0 %v494
    %609 = vmatpush1.bf16.msra.mxu0 %v493
    %610 = vmatprep.subr.bf16.mxu0 %v497
    %611 = vmatpush1.bf16.msra.mxu0 %v496
    %612 = vmatprep.subr.bf16.mxu0 %v500
    %613 = vmatpush1.bf16.msra.mxu0 %v499
    %614 = vmatprep.subr.bf16.mxu0 %v503
    %615 = vmatpush1.bf16.msra.mxu0 %v502
    %616 = vmatprep.subr.bf16.mxu0 %v506
    %617 = vmatpush1.bf16.msra.mxu0 %v505
    %618 = vmatprep.subr.bf16.mxu0 %v509
    %619 = vmatpush1.bf16.msra.mxu0 %v508
    %620 = vmatprep.subr.bf16.mxu0 %v512
    %621 = vmatpush1.bf16.msra.mxu0 %v511
    %622 = vmatprep.mubr.bf16.mxu0 %v167
    %623 = vmatmul.mubr.bf16.gmra.mrb[0].mxu0 %v166
    %v624 = vpop.f32.mrb[0].mxu0
    %v625 = vadd.f32 %v254, %v624
    %v626 = vpop.f32.mrb[0].mxu0
    %v627 = vadd.f32 %v258, %v626
    %v628 = vpop.f32.mrb[0].mxu0
    %v629 = vpop.f32.mrb[0].mxu0
    %630 = vdwg.mxu0
    %631 = vmatprep.subr.bf16.mxu0 %v515
    %632 = vmatpush1.bf16.msra.mxu0 %v514
    %633 = vmatprep.subr.bf16.mxu0 %v518
    %634 = vmatpush1.bf16.msra.mxu0 %v517
    %635 = vmatprep.subr.bf16.mxu0 %v521
    %636 = vmatpush1.bf16.msra.mxu0 %v520
    %637 = vmatprep.subr.bf16.mxu0 %v524
    %638 = vmatpush1.bf16.msra.mxu0 %v523
    %639 = vmatprep.subr.bf16.mxu0 0
    %640 = vmatpush1.bf16.msra.mxu0 0
    %641 = vmatprep.subr.bf16.mxu0 0
    %642 = vmatpush1.bf16.msra.mxu0 0
    %643 = vmatprep.subr.bf16.mxu0 0
    %644 = vmatpush1.bf16.msra.mxu0 0
    %645 = vmatprep.subr.bf16.mxu0 0
    %646 = vmatpush1.bf16.msra.mxu0 0
    %647 = vmatprep.subr.bf16.mxu0 0
    %648 = vmatpush1.bf16.msra.mxu0 0
    %649 = vmatprep.subr.bf16.mxu0 0
    %650 = vmatpush1.bf16.msra.mxu0 0
    %651 = vmatprep.subr.bf16.mxu0 0
    %652 = vmatpush1.bf16.msra.mxu0 0
    %653 = vmatprep.subr.bf16.mxu0 0
    %654 = vmatpush1.bf16.msra.mxu0 0
    %655 = vmatprep.subr.bf16.mxu0 0
    %656 = vmatpush1.bf16.msra.mxu0 0
    %657 = vmatprep.subr.bf16.mxu0 0
    %658 = vmatpush1.bf16.msra.mxu0 0
    %659 = vmatprep.subr.bf16.mxu0 0
    %660 = vmatpush1.bf16.msra.mxu0 0
    %661 = vmatprep.subr.bf16.mxu0 0
    %662 = vmatpush1.bf16.msra.mxu0 0
    %663 = vmatprep.mubr.bf16.mxu0 0
    %664 = vmatmul.mubr.bf16.gmra.mrb[0].mxu0 %v588
    %v665 = vpop.f32.mrb[0].mxu0
    %v666 = vadd.f32 %v625, %v665
    %v667 = vpop.f32.mrb[0].mxu0
    %v668 = vadd.f32 %v627, %v667
    %v669 = vpop.f32.mrb[0].mxu0
    %v670 = vpop.f32.mrb[0].mxu0
    %671 = vdwg.mxu0
    %672 = vmatprep.subr.bf16.mxu0 0
    %673 = vmatpush1.bf16.msra.mxu0 %v468
    %674 = vmatprep.subr.bf16.mxu0 0
    %675 = vmatpush1.bf16.msra.mxu0 %v471
    %676 = vmatprep.subr.bf16.mxu0 0
    %677 = vmatpush1.bf16.msra.mxu0 %v474
    %678 = vmatprep.subr.bf16.mxu0 0
    %679 = vmatpush1.bf16.msra.mxu0 %v477
    %680 = vmatprep.subr.bf16.mxu0 0
    %681 = vmatpush1.bf16.msra.mxu0 %v480
    %682 = vmatprep.subr.bf16.mxu0 0
    %683 = vmatpush1.bf16.msra.mxu0 %v483
    %684 = vmatprep.subr.bf16.mxu0 0
    %685 = vmatpush1.bf16.msra.mxu0 %v486
    %686 = vmatprep.subr.bf16.mxu0 0
    %687 = vmatpush1.bf16.msra.mxu0 %v489
    %688 = vmatprep.subr.bf16.mxu0 0
    %689 = vmatpush1.bf16.msra.mxu0 %v492
    %690 = vmatprep.subr.bf16.mxu0 0
    %691 = vmatpush1.bf16.msra.mxu0 %v495
    %692 = vmatprep.subr.bf16.mxu0 0
    %693 = vmatpush1.bf16.msra.mxu0 %v498
    %694 = vmatprep.subr.bf16.mxu0 0
    %695 = vmatpush1.bf16.msra.mxu0 %v501
    %696 = vmatprep.subr.bf16.mxu0 0
    %697 = vmatpush1.bf16.msra.mxu0 %v504
    %698 = vmatprep.subr.bf16.mxu0 0
    %699 = vmatpush1.bf16.msra.mxu0 %v507
    %700 = vmatprep.subr.bf16.mxu0 0
    %701 = vmatpush1.bf16.msra.mxu0 %v510
    %702 = vmatprep.subr.bf16.mxu0 0
    %703 = vmatpush1.bf16.msra.mxu0 %v513
    %704 = vmatprep.mubr.bf16.mxu0 %v167
    %705 = vmatmul.mubr.bf16.gmra.mrb[0].mxu0 %v166
    %v706 = vpop.f32.mrb[0].mxu0
    %v707 = vadd.f32 %v262, %v706
    %v708 = vpop.f32.mrb[0].mxu0
    %v709 = vpop.f32.mrb[0].mxu0
    %v710 = vpop.f32.mrb[0].mxu0
    %711 = vdwg.mxu0
    %712 = vmatprep.subr.bf16.mxu0 0
    %713 = vmatpush1.bf16.msra.mxu0 %v516
    %714 = vmatprep.subr.bf16.mxu0 0
    %715 = vmatpush1.bf16.msra.mxu0 %v519
    %716 = vmatprep.subr.bf16.mxu0 0
    %717 = vmatpush1.bf16.msra.mxu0 %v522
    %718 = vmatprep.subr.bf16.mxu0 0
    %719 = vmatpush1.bf16.msra.mxu0 %v525
    %720 = vmatprep.subr.bf16.mxu0 0
    %721 = vmatpush1.bf16.msra.mxu0 0
    %722 = vmatprep.subr.bf16.mxu0 0
    %723 = vmatpush1.bf16.msra.mxu0 0
    %724 = vmatprep.subr.bf16.mxu0 0
    %725 = vmatpush1.bf16.msra.mxu0 0
    %726 = vmatprep.subr.bf16.mxu0 0
    %727 = vmatpush1.bf16.msra.mxu0 0
    %728 = vmatprep.subr.bf16.mxu0 0
    %729 = vmatpush1.bf16.msra.mxu0 0
    %730 = vmatprep.subr.bf16.mxu0 0
    %731 = vmatpush1.bf16.msra.mxu0 0
    %732 = vmatprep.subr.bf16.mxu0 0
    %733 = vmatpush1.bf16.msra.mxu0 0
    %734 = vmatprep.subr.bf16.mxu0 0
    %735 = vmatpush1.bf16.msra.mxu0 0
    %736 = vmatprep.subr.bf16.mxu0 0
    %737 = vmatpush1.bf16.msra.mxu0 0
    %738 = vmatprep.subr.bf16.mxu0 0
    %739 = vmatpush1.bf16.msra.mxu0 0
    %740 = vmatprep.subr.bf16.mxu0 0
    %741 = vmatpush1.bf16.msra.mxu0 0
    %742 = vmatprep.subr.bf16.mxu0 0
    %743 = vmatpush1.bf16.msra.mxu0 0
    %744 = vmatprep.mubr.bf16.mxu0 0
    %745 = vmatmul.mubr.bf16.gmra.mrb[0].mxu0 %v588
    %v746 = vpop.f32.mrb[0].mxu0
    %v747 = vadd.f32 %v707, %v746
    %v748 = vpop.f32.mrb[0].mxu0
    %v749 = vpop.f32.mrb[0].mxu0
    %v750 = vpop.f32.mrb[0].mxu0
    %751 = vdwg.mxu0
    %v752 = vmax.f32 %v666, 0.0
    %v753 = vmax.f32 %v668, 0.0
    %v754 = vmax.f32 %v747, 0.0
    %v755 = vpack.c.bf16 %v752, %v752
    %v756 = vpack.c.bf16 %v753, %v753
    %v757 = vpack.c.bf16 %v754, %v754
    %v758 = vld [vmem:[%s5] sm:$0xff]
    %v759 = vld [vmem:[%s5 + $0x8] sm:$0xff]
    %v760 = vld [vmem:[%s5 + $0x10] sm:$0xff]
    %v761 = vld [vmem:[%s5 + $0x18] sm:$0xff]
    %v762 = vld [vmem:[%s5 + $0x20] sm:$0xff]
    %v763 = vld [vmem:[%s5 + $0x28] sm:$0xff]
    %v764 = vld [vmem:[%s5 + $0x30] sm:$0xff]
    %v765 = vld [vmem:[%s5 + $0x38] sm:$0xff]
    %v766 = vld [vmem:[%s5 + $0x40] sm:$0xff]
    %v767 = vld [vmem:[%s5 + $0x48] sm:$0xff]
    %v768 = vld [vmem:[%s5 + $0x50] sm:$0xff]
    %v769 = vld [vmem:[%s5 + $0x58] sm:$0xff]
    %v770 = vld [vmem:[%s5 + $0x60] sm:$0xff]
    %v771 = vld [vmem:[%s5 + $0x68] sm:$0xff]
    %v772 = vld [vmem:[%s5 + $0x70] sm:$0xff]
    %v773 = vld [vmem:[%s5 + $0x78] sm:$0xff]
    %v774 = vld [vmem:[%s5 + $0x80] sm:$0xff]
    %v775 = vld [vmem:[%s5 + $0x88] sm:$0xff]
    %v776 = vld [vmem:[%s5 + $0x90] sm:$0xff]
    %v777 = vld [vmem:[%s5 + $0x98] sm:$0xff]
    %v778 = vld [vmem:[%s5 + $0xa0] sm:$0xff]
    %v779 = vld [vmem:[%s5 + $0xa8] sm:$0xff]
    %v780 = vld [vmem:[%s5 + $0xb0] sm:$0xff]
    %v781 = vld [vmem:[%s5 + $0xb8] sm:$0xff]
    %v782 = vld [vmem:[%s5 + $0xc0] sm:$0xff]
    %v783 = vld [vmem:[%s5 + $0xc8] sm:$0xff]
    %v784 = vld [vmem:[%s5 + $0xd0] sm:$0xff]
    %v785 = vld [vmem:[%s5 + $0xd8] sm:$0xff]
    %v786 = vld [vmem:[%s5 + $0xe0] sm:$0xff]
    %v787 = vld [vmem:[%s5 + $0xe8] sm:$0xff]
    %v788 = vld [vmem:[%s5 + $0xf0] sm:$0xff]
    %v789 = vld [vmem:[%s5 + $0xf8] sm:$0xff]
    %v790 = vld [vmem:[%s5 + $0x100] sm:$0xff]
    %v791 = vld [vmem:[%s5 + $0x108] sm:$0xff]
    %v792 = vld [vmem:[%s5 + $0x110] sm:$0xff]
    %v793 = vld [vmem:[%s5 + $0x118] sm:$0xff]
    %v794 = vld [vmem:[%s5 + $0x120] sm:$0xff]
    %v795 = vld [vmem:[%s5 + $0x128] sm:$0xff]
    %v796 = vld [vmem:[%s5 + $0x130] sm:$0xff]
    %v797 = vld [vmem:[%s5 + $0x138] sm:$0xff]
    %v798 = vld [vmem:[%s6] sm:$0x3]
    %v800 = vlaneseq
    %v801 = vshrl.u32 %v800, 7
    %v802 = vsub.s32 0, %v801
    %v803 = vrot.slane %v798, %v802
    %v804 = vlaneseq
    %v805 = vshrl.u32 %v804, 7
    %v806 = vsub.s32 1, %v805
    %v807 = vrot.slane %v798, %v806
    %v850 = vunpack.c.l.b16 %v758
    %v851 = vunpack.c.h.b16 %v758
    %v852 = vunpack.c.l.b16 %v759
    %v853 = vunpack.c.h.b16 %v759
    %v854 = vunpack.c.l.b16 %v760
    %v855 = vunpack.c.h.b16 %v760
    %v856 = vunpack.c.l.b16 %v761
    %v857 = vunpack.c.h.b16 %v761
    %v858 = vunpack.c.l.b16 %v762
    %v859 = vunpack.c.h.b16 %v762
    %v860 = vunpack.c.l.b16 %v763
    %v861 = vunpack.c.h.b16 %v763
    %v862 = vunpack.c.l.b16 %v764
    %v863 = vunpack.c.h.b16 %v764
    %v864 = vunpack.c.l.b16 %v765
    %v865 = vunpack.c.h.b16 %v765
    %v866 = vunpack.c.l.b16 %v766
    %v867 = vunpack.c.h.b16 %v766
    %v868 = vunpack.c.l.b16 %v767
    %v869 = vunpack.c.h.b16 %v767
    %v870 = vunpack.c.l.b16 %v768
    %v871 = vunpack.c.h.b16 %v768
    %v872 = vunpack.c.l.b16 %v769
    %v873 = vunpack.c.h.b16 %v769
    %v874 = vunpack.c.l.b16 %v770
    %v875 = vunpack.c.h.b16 %v770
    %v876 = vunpack.c.l.b16 %v771
    %v877 = vunpack.c.h.b16 %v771
    %v878 = vunpack.c.l.b16 %v772
    %v879 = vunpack.c.h.b16 %v772
    %v880 = vunpack.c.l.b16 %v773
    %v881 = vunpack.c.h.b16 %v773
    %v882 = vunpack.c.l.b16 %v774
    %v883 = vunpack.c.h.b16 %v774
    %v884 = vunpack.c.l.b16 %v775
    %v885 = vunpack.c.h.b16 %v775
    %v886 = vunpack.c.l.b16 %v776
    %v887 = vunpack.c.h.b16 %v776
    %v888 = vunpack.c.l.b16 %v777
    %v889 = vunpack.c.h.b16 %v777
    %v890 = vunpack.c.l.b16 %v778
    %v891 = vunpack.c.h.b16 %v778
    %v892 = vunpack.c.l.b16 %v779
    %v893 = vunpack.c.h.b16 %v779
    %v894 = vunpack.c.l.b16 %v780
    %v895 = vunpack.c.h.b16 %v780
    %v896 = vunpack.c.l.b16 %v781
    %v897 = vunpack.c.h.b16 %v781
    %v898 = vunpack.c.l.b16 %v782
    %v899 = vunpack.c.h.b16 %v782
    %v900 = vunpack.c.l.b16 %v783
    %v901 = vunpack.c.h.b16 %v783
    %v902 = vunpack.c.l.b16 %v784
    %v903 = vunpack.c.h.b16 %v784
    %v904 = vunpack.c.l.b16 %v785
    %v905 = vunpack.c.h.b16 %v785
    %v906 = vunpack.c.l.b16 %v786
    %v907 = vunpack.c.h.b16 %v786
    %v908 = vunpack.c.l.b16 %v787
    %v909 = vunpack.c.h.b16 %v787
    %v910 = vunpack.c.l.b16 %v788
    %v911 = vunpack.c.h.b16 %v788
    %v912 = vunpack.c.l.b16 %v789
    %v913 = vunpack.c.h.b16 %v789
    %v914 = vunpack.c.l.b16 %v790
    %v915 = vunpack.c.h.b16 %v790
    %v916 = vunpack.c.l.b16 %v791
    %v917 = vunpack.c.h.b16 %v791
    %v918 = vunpack.c.l.b16 %v792
    %v919 = vunpack.c.h.b16 %v792
    %v920 = vunpack.c.l.b16 %v793
    %v921 = vunpack.c.h.b16 %v793
    %v922 = vunpack.c.l.b16 %v794
    %v923 = vunpack.c.h.b16 %v794
    %v924 = vunpack.c.l.b16 %v795
    %v925 = vunpack.c.h.b16 %v795
    %v926 = vunpack.c.l.b16 %v796
    %v927 = vunpack.c.h.b16 %v796
    %v928 = vunpack.c.l.b16 %v797
    %v929 = vunpack.c.h.b16 %v797
    %v930 = vpack.c.b16 %v852, %v850
    %v931 = vpack.c.b16 %v853, %v851
    %v932 = vpack.c.b16 %v856, %v854
    %v933 = vpack.c.b16 %v857, %v855
    %v934 = vpack.c.b16 %v860, %v858
    %v935 = vpack.c.b16 %v861, %v859
    %v936 = vpack.c.b16 %v864, %v862
    %v937 = vpack.c.b16 %v865, %v863
    %v938 = vpack.c.b16 %v868, %v866
    %v939 = vpack.c.b16 %v869, %v867
    %v940 = vpack.c.b16 %v872, %v870
    %v941 = vpack.c.b16 %v873, %v871
    %v942 = vpack.c.b16 %v876, %v874
    %v943 = vpack.c.b16 %v877, %v875
    %v944 = vpack.c.b16 %v880, %v878
    %v945 = vpack.c.b16 %v881, %v879
    %v946 = vpack.c.b16 %v884, %v882
    %v947 = vpack.c.b16 %v885, %v883
    %v948 = vpack.c.b16 %v888, %v886
    %v949 = vpack.c.b16 %v889, %v887
    %v950 = vpack.c.b16 %v892, %v890
    %v951 = vpack.c.b16 %v893, %v891
    %v952 = vpack.c.b16 %v896, %v894
    %v953 = vpack.c.b16 %v897, %v895
    %v954 = vpack.c.b16 %v900, %v898
    %v955 = vpack.c.b16 %v901, %v899
    %v956 = vpack.c.b16 %v904, %v902
    %v957 = vpack.c.b16 %v905, %v903
    %v958 = vpack.c.b16 %v908, %v906
    %v959 = vpack.c.b16 %v909, %v907
    %v960 = vpack.c.b16 %v912, %v910
    %v961 = vpack.c.b16 %v913, %v911
    %v962 = vpack.c.b16 %v916, %v914
    %v963 = vpack.c.b16 %v917, %v915
    %v964 = vpack.c.b16 %v920, %v918
    %v965 = vpack.c.b16 %v921, %v919
    %v966 = vpack.c.b16 %v924, %v922
    %v967 = vpack.c.b16 %v925, %v923
    %v968 = vpack.c.b16 %v928, %v926
    %v969 = vpack.c.b16 %v929, %v927
    %v1011 = vsel %vm586, %v757, 0
    %1013 = vmatprep.subr.bf16.mxu0 %v931
    %1014 = vmatpush1.bf16.msra.mxu0 %v930
    %1015 = vmatprep.subr.bf16.mxu0 %v933
    %1016 = vmatpush1.bf16.msra.mxu0 %v932
    %1017 = vmatprep.subr.bf16.mxu0 %v935
    %1018 = vmatpush1.bf16.msra.mxu0 %v934
    %1019 = vmatprep.subr.bf16.mxu0 %v937
    %1020 = vmatpush1.bf16.msra.mxu0 %v936
    %1021 = vmatprep.subr.bf16.mxu0 %v939
    %1022 = vmatpush1.bf16.msra.mxu0 %v938
    %1023 = vmatprep.subr.bf16.mxu0 %v941
    %1024 = vmatpush1.bf16.msra.mxu0 %v940
    %1025 = vmatprep.subr.bf16.mxu0 %v943
    %1026 = vmatpush1.bf16.msra.mxu0 %v942
    %1027 = vmatprep.subr.bf16.mxu0 %v945
    %1028 = vmatpush1.bf16.msra.mxu0 %v944
    %1029 = vmatprep.subr.bf16.mxu0 %v947
    %1030 = vmatpush1.bf16.msra.mxu0 %v946
    %1031 = vmatprep.subr.bf16.mxu0 %v949
    %1032 = vmatpush1.bf16.msra.mxu0 %v948
    %1033 = vmatprep.subr.bf16.mxu0 %v951
    %1034 = vmatpush1.bf16.msra.mxu0 %v950
    %1035 = vmatprep.subr.bf16.mxu0 %v953
    %1036 = vmatpush1.bf16.msra.mxu0 %v952
    %1037 = vmatprep.subr.bf16.mxu0 %v955
    %1038 = vmatpush1.bf16.msra.mxu0 %v954
    %1039 = vmatprep.subr.bf16.mxu0 %v957
    %1040 = vmatpush1.bf16.msra.mxu0 %v956
    %1041 = vmatprep.subr.bf16.mxu0 %v959
    %1042 = vmatpush1.bf16.msra.mxu0 %v958
    %1043 = vmatprep.subr.bf16.mxu0 %v961
    %1044 = vmatpush1.bf16.msra.mxu0 %v960
    %1045 = vmatprep.mubr.bf16.mxu0 %v756
    %1046 = vmatmul.mubr.bf16.gmra.mrb[0].mxu0 %v755
    %v1047 = vpop.f32.mrb[0].mxu0
    %v1048 = vadd.f32 %v803, %v1047
    %v1049 = vpop.f32.mrb[0].mxu0
    %v1050 = vadd.f32 %v807, %v1049
    %v1051 = vpop.f32.mrb[0].mxu0
    %v1052 = vpop.f32.mrb[0].mxu0
    %1053 = vdwg.mxu0
    %1054 = vmatprep.subr.bf16.mxu0 %v963
    %1055 = vmatpush1.bf16.msra.mxu0 %v962
    %1056 = vmatprep.subr.bf16.mxu0 %v965
    %1057 = vmatpush1.bf16.msra.mxu0 %v964
    %1058 = vmatprep.subr.bf16.mxu0 %v967
    %1059 = vmatpush1.bf16.msra.mxu0 %v966
    %1060 = vmatprep.subr.bf16.mxu0 %v969
    %1061 = vmatpush1.bf16.msra.mxu0 %v968
    %1062 = vmatprep.subr.bf16.mxu0 0
    %1063 = vmatpush1.bf16.msra.mxu0 0
    %1064 = vmatprep.subr.bf16.mxu0 0
    %1065 = vmatpush1.bf16.msra.mxu0 0
    %1066 = vmatprep.subr.bf16.mxu0 0
    %1067 = vmatpush1.bf16.msra.mxu0 0
    %1068 = vmatprep.subr.bf16.mxu0 0
    %1069 = vmatpush1.bf16.msra.mxu0 0
    %1070 = vmatprep.subr.bf16.mxu0 0
    %1071 = vmatpush1.bf16.msra.mxu0 0
    %1072 = vmatprep.subr.bf16.mxu0 0
    %1073 = vmatpush1.bf16.msra.mxu0 0
    %1074 = vmatprep.subr.bf16.mxu0 0
    %1075 = vmatpush1.bf16.msra.mxu0 0
    %1076 = vmatprep.subr.bf16.mxu0 0
    %1077 = vmatpush1.bf16.msra.mxu0 0
    %1078 = vmatprep.subr.bf16.mxu0 0
    %1079 = vmatpush1.bf16.msra.mxu0 0
    %1080 = vmatprep.subr.bf16.mxu0 0
    %1081 = vmatpush1.bf16.msra.mxu0 0
    %1082 = vmatprep.subr.bf16.mxu0 0
    %1083 = vmatpush1.bf16.msra.mxu0 0
    %1084 = vmatprep.subr.bf16.mxu0 0
    %1085 = vmatpush1.bf16.msra.mxu0 0
    %1086 = vmatprep.mubr.bf16.mxu0 0
    %1087 = vmatmul.mubr.bf16.gmra.mrb[0].mxu0 %v1011
    %v1088 = vpop.f32.mrb[0].mxu0
    %v1089 = vadd.f32 %v1048, %v1088
    %v1090 = vpop.f32.mrb[0].mxu0
    %v1091 = vadd.f32 %v1050, %v1090
    %v1092 = vpop.f32.mrb[0].mxu0
    %v1093 = vpop.f32.mrb[0].mxu0
    %1094 = vdwg.mxu0
    %v1095 = vmax.f32 %v1089, 0.0
    %v1096 = vmax.f32 %v1091, 0.0
    %v1097 = vpack.c.bf16 %v1095, %v1095
    %v1098 = vpack.c.bf16 %v1096, %v1096
    %v1099 = vld [vmem:[%s7] sm:$0xf]
    %v1100 = vld [vmem:[%s7 + $0x4] sm:$0xf]
    %v1101 = vld [vmem:[%s7 + $0x8] sm:$0xf]
    %v1102 = vld [vmem:[%s7 + $0xc] sm:$0xf]
    %v1103 = vld [vmem:[%s7 + $0x10] sm:$0xf]
    %v1104 = vld [vmem:[%s7 + $0x14] sm:$0xf]
    %v1105 = vld [vmem:[%s7 + $0x18] sm:$0xf]
    %v1106 = vld [vmem:[%s7 + $0x1c] sm:$0xf]
    %v1107 = vld [vmem:[%s7 + $0x20] sm:$0xf]
    %v1108 = vld [vmem:[%s7 + $0x24] sm:$0xf]
    %v1109 = vld [vmem:[%s7 + $0x28] sm:$0xf]
    %v1110 = vld [vmem:[%s7 + $0x2c] sm:$0xf]
    %v1111 = vld [vmem:[%s7 + $0x30] sm:$0xf]
    %v1112 = vld [vmem:[%s7 + $0x34] sm:$0xf]
    %v1113 = vld [vmem:[%s7 + $0x38] sm:$0xf]
    %v1114 = vld [vmem:[%s7 + $0x3c] sm:$0xf]
    %v1115 = vld [vmem:[%s7 + $0x40] sm:$0xf]
    %v1116 = vld [vmem:[%s7 + $0x44] sm:$0xf]
    %v1117 = vld [vmem:[%s7 + $0x48] sm:$0xf]
    %v1118 = vld [vmem:[%s7 + $0x4c] sm:$0xf]
    %v1119 = vld [vmem:[%s8] sm:$0x1]
    %v1121 = vlaneseq
    %v1122 = vshrl.u32 %v1121, 7
    %v1123 = vsub.s32 0, %v1122
    %v1124 = vrot.slane %v1119, %v1123
    %v1146 = vunpack.c.l.b16 %v1099
    %v1147 = vunpack.c.l.b16 %v1100
    %v1148 = vunpack.c.l.b16 %v1101
    %v1149 = vunpack.c.l.b16 %v1102
    %v1150 = vunpack.c.l.b16 %v1103
    %v1151 = vunpack.c.l.b16 %v1104
    %v1152 = vunpack.c.l.b16 %v1105
    %v1153 = vunpack.c.l.b16 %v1106
    %v1154 = vunpack.c.l.b16 %v1107
    %v1155 = vunpack.c.l.b16 %v1108
    %v1156 = vunpack.c.l.b16 %v1109
    %v1157 = vunpack.c.l.b16 %v1110
    %v1158 = vunpack.c.l.b16 %v1111
    %v1159 = vunpack.c.l.b16 %v1112
    %v1160 = vunpack.c.l.b16 %v1113
    %v1161 = vunpack.c.l.b16 %v1114
    %v1162 = vunpack.c.l.b16 %v1115
    %v1163 = vunpack.c.l.b16 %v1116
    %v1164 = vunpack.c.l.b16 %v1117
    %v1165 = vunpack.c.l.b16 %v1118
    %v1166 = vpack.c.b16 %v1147, %v1146
    %v1167 = vpack.c.b16 %v1149, %v1148
    %v1168 = vpack.c.b16 %v1151, %v1150
    %v1169 = vpack.c.b16 %v1153, %v1152
    %v1170 = vpack.c.b16 %v1155, %v1154
    %v1171 = vpack.c.b16 %v1157, %v1156
    %v1172 = vpack.c.b16 %v1159, %v1158
    %v1173 = vpack.c.b16 %v1161, %v1160
    %v1174 = vpack.c.b16 %v1163, %v1162
    %v1175 = vpack.c.b16 %v1165, %v1164
    %vm1186 = vcmask 261120
    %v1188 = vsel %vm1186, %v1098, 0
    %1190 = vmatprep.subr.bf16.mxu0 0
    %1191 = vmatpush1.bf16.msra.mxu0 %v1166
    %1192 = vmatprep.subr.bf16.mxu0 0
    %1193 = vmatpush1.bf16.msra.mxu0 %v1167
    %1194 = vmatprep.subr.bf16.mxu0 0
    %1195 = vmatpush1.bf16.msra.mxu0 %v1168
    %1196 = vmatprep.subr.bf16.mxu0 0
    %1197 = vmatpush1.bf16.msra.mxu0 %v1169
    %1198 = vmatprep.subr.bf16.mxu0 0
    %1199 = vmatpush1.bf16.msra.mxu0 %v1170
    %1200 = vmatprep.subr.bf16.mxu0 0
    %1201 = vmatpush1.bf16.msra.mxu0 %v1171
    %1202 = vmatprep.subr.bf16.mxu0 0
    %1203 = vmatpush1.bf16.msra.mxu0 %v1172
    %1204 = vmatprep.subr.bf16.mxu0 0
    %1205 = vmatpush1.bf16.msra.mxu0 %v1173
    %1206 = vmatprep.subr.bf16.mxu0 0
    %1207 = vmatpush1.bf16.msra.mxu0 %v1174
    %1208 = vmatprep.subr.bf16.mxu0 0
    %1209 = vmatpush1.bf16.msra.mxu0 %v1175
    %1210 = vmatprep.subr.bf16.mxu0 0
    %1211 = vmatpush1.bf16.msra.mxu0 0
    %1212 = vmatprep.subr.bf16.mxu0 0
    %1213 = vmatpush1.bf16.msra.mxu0 0
    %1214 = vmatprep.subr.bf16.mxu0 0
    %1215 = vmatpush1.bf16.msra.mxu0 0
    %1216 = vmatprep.subr.bf16.mxu0 0
    %1217 = vmatpush1.bf16.msra.mxu0 0
    %1218 = vmatprep.subr.bf16.mxu0 0
    %1219 = vmatpush1.bf16.msra.mxu0 0
    %1220 = vmatprep.subr.bf16.mxu0 0
    %1221 = vmatpush1.bf16.msra.mxu0 0
    %1222 = vmatprep.mubr.bf16.mxu0 %v1188
    %1223 = vmatmul.mubr.bf16.gmra.mrb[0].mxu0 %v1097
    %v1224 = vpop.f32.mrb[0].mxu0
    %v1225 = vadd.f32 %v1124, %v1224
    %v1226 = vpop.f32.mrb[0].mxu0
    %v1227 = vpop.f32.mrb[0].mxu0
    %v1228 = vpop.f32.mrb[0].mxu0
    %1229 = vdwg.mxu0
    %v1230 = vmax.f32 %v1225, 0.0
    %v1231 = vld [vmem:[%s9] sm:$0xf]
    %v1232 = vpack.c.bf16 %v1230, %v1230
    %v1233 = vld [vmem:[%s10] sm:$0xff]
    %1235 = vset.pattern.permute.xlu0 0
    %1236 = vperm.xlu0 %1235, %v1233
    %v1237 = vpop.permute.xlu0 %1236
    %v1240 = vsel %vm78, %v1231, 0
    %v1243 = vsel %vm78, %v1232, 0
    %1245 = vmatprep.subr.bf16.mxu0 0
    %1246 = vmatpush1.bf16.xpose.msra.mxu0 %v1243
    %1247 = vmatprep.subr.bf16.mxu0 0
    %1248 = vmatpush1.bf16.xpose.msra.mxu0 0
    %1249 = vmatprep.subr.bf16.mxu0 0
    %1250 = vmatpush1.bf16.xpose.msra.mxu0 0
    %1251 = vmatprep.subr.bf16.mxu0 0
    %1252 = vmatpush1.bf16.xpose.msra.mxu0 0
    %1253 = vmatprep.subr.bf16.mxu0 0
    %1254 = vmatpush1.bf16.xpose.msra.mxu0 0
    %1255 = vmatprep.subr.bf16.mxu0 0
    %1256 = vmatpush1.bf16.xpose.msra.mxu0 0
    %1257 = vmatprep.subr.bf16.mxu0 0
    %1258 = vmatpush1.bf16.xpose.msra.mxu0 0
    %1259 = vmatprep.subr.bf16.mxu0 0
    %1260 = vmatpush1.bf16.xpose.msra.mxu0 0
    %1261 = vmatprep.subr.bf16.mxu0 0
    %1262 = vmatpush1.bf16.xpose.msra.mxu0 0
    %1263 = vmatprep.subr.bf16.mxu0 0
    %1264 = vmatpush1.bf16.xpose.msra.mxu0 0
    %1265 = vmatprep.subr.bf16.mxu0 0
    %1266 = vmatpush1.bf16.xpose.msra.mxu0 0
    %1267 = vmatprep.subr.bf16.mxu0 0
    %1268 = vmatpush1.bf16.xpose.msra.mxu0 0
    %1269 = vmatprep.subr.bf16.mxu0 0
    %1270 = vmatpush1.bf16.xpose.msra.mxu0 0
    %1271 = vmatprep.subr.bf16.mxu0 0
    %1272 = vmatpush1.bf16.xpose.msra.mxu0 0
    %1273 = vmatprep.subr.bf16.mxu0 0
    %1274 = vmatpush1.bf16.xpose.msra.mxu0 0
    %1275 = vmatprep.subr.bf16.mxu0 0
    %1276 = vmatpush1.bf16.xpose.msra.mxu0 0
    %1277 = vmatprep.mubr.bf16.mxu0 0
    %1278 = vmatmul.mubr.bf16.gmra.mrb[0].mxu0 %v1240
    %v1279 = vpop.f32.mrb[0].mxu0
    %v1280 = vadd.f32 %v1237, %v1279
    %v1281 = vpop.f32.mrb[0].mxu0
    %v1282 = vpop.f32.mrb[0].mxu0
    %v1283 = vpop.f32.mrb[0].mxu0
    %1284 = vdwg.mxu0
    %v1285 = vxor.u32 %v1280, 2147483648
    %v1286 = vmul.f32 %v1285, 1.442695
    %v1287 = vpow.pop %v1286
    %v1288 = vadd.f32 %v1287, 1.0
    %v1289 = vrcp.pop %v1288
    %v1290 = vmul.f32 1.0, %v1289
    %vm1291 = vcmask 64512
    %1292 = vst.msk [vmem:[#allocation2] sm:$0xff] %vm1291, %v1290
    // Predicated region
    $region46: #{tpu_custom_call.1} parent=1 // pred_check
      _
    $region47: #{tpu_custom_call.1} parent=1 // pred_check_branch
      %1294 = sbr.rel (0) target = $region49
    $region48: #{tpu_custom_call.1} parent=1 // pred_region
      %s1296 = ssub.s32 128, 128
      %1297 = vsyncadd [#allocation3], %s1296
      %s1299 = sshll.u32 [#allocation2], 4
      %s1300 = int_to_ptr.vmem [resolvable:$true] %s1299
      %1302 = dma.vmem_to_hbm [thread:$0]  %s1300, 128, %s11, [#allocation3]
    $region49: #{tpu_custom_call.1} parent=1 // pred_fallthru
      _
    // Predicated region
    $region50: #{tpu_custom_call.1} parent=1 // pred_check
      _
    $region51: #{tpu_custom_call.1} parent=1 // pred_check_branch
      %1304 = sbr.rel (0) target = $region53
    $region52: #{tpu_custom_call.1} parent=1 // pred_region
      %1305 = dma.done [#allocation3], 128
    $region53: #{tpu_custom_call.1} parent=1 // pred_fallthru
      _
    %1306 = vsyncpa [#allocation3], 1

// kernel: tpu_custom_call.1
$region0: #{tpu_custom_call.1}
  #allocation0 [shape = 'u32[]', space=smem, size = 0x4, offset = 0x4, fixed_abs, tag = 'smem constant byte address 0x4 - core index']
  #allocation1 [shape = 'u32[144,128]{1,0:T(1,128)}', space=vmem, size = 0x12000, scoped, tag = 'internal scratch']
  %s0 = inlined_call_operand.vmem [shape: bf16[8,16], index: 0, kind: input, shape index: {}]
  %s1 = inlined_call_operand.vmem [shape: bf16[16,320], index: 1, kind: input, shape index: {}]
  %s2 = inlined_call_operand.vmem [shape: f32[1,320], index: 2, kind: input, shape index: {}]
  %s3 = inlined_call_operand.vmem [shape: bf16[320,320], index: 3, kind: input, shape index: {}]
  %s4 = inlined_call_operand.vmem [shape: f32[1,320], index: 4, kind: input, shape index: {}]
  %s5 = inlined_call_operand.vmem [shape: bf16[320,160], index: 5, kind: input, shape index: {}]
  %s6 = inlined_call_operand.vmem [shape: f32[1,160], index: 6, kind: input, shape index: {}]
  %s7 = inlined_call_operand.vmem [shape: bf16[160,16], index: 7, kind: input, shape index: {}]
  %s8 = inlined_call_operand.vmem [shape: f32[1,16], index: 8, kind: input, shape index: {}]
  %s9 = inlined_call_operand.vmem [shape: bf16[8,16], index: 9, kind: input, shape index: {}]
  %s10 = inlined_call_operand.vmem [shape: f32[8,1], index: 10, kind: input, shape index: {}]
  %s11 = inlined_call_operand.hbm [shape: f32[8,8], index: 11, kind: output, shape index: {}]
  %s12 = sld [smem:[#allocation0]]
  $region54: #{tpu_custom_call.1} parent=0
    _
  %s14 = ssub.s32 1, %s12
  %s15 = scalar_select 0, %s14, %s12
  $region1: #{tpu_custom_call.1} parent=0
    #allocation2 [shape = 'u8[4096]{0}', space=vmem, size = 0x1000, scoped, tag = 'output window, operand 0, single buffered']
    #allocation3 [shape = 's32[1]{0}', space=sflag, size = 0x4, scoped, tag = 'scoped memory for tpu_custom_call.1']
    %16 = vsyncpa [#allocation3], 0
    // Predicated region
    $region2: #{tpu_custom_call.1} parent=1 // pred_check
      _
    $region3: #{tpu_custom_call.1} parent=1 // pred_check_branch
      %18 = sbr.rel (0) target = $region5
    $region4: #{tpu_custom_call.1} parent=1 // pred_region
      _
    $region5: #{tpu_custom_call.1} parent=1 // pred_fallthru
      _
    // Predicated region
    $region6: #{tpu_custom_call.1} parent=1 // pred_check
      _
    $region7: #{tpu_custom_call.1} parent=1 // pred_check_branch
      %20 = sbr.rel (0) target = $region9
    $region8: #{tpu_custom_call.1} parent=1 // pred_region
      _
    $region9: #{tpu_custom_call.1} parent=1 // pred_fallthru
      _
    // Predicated region
    $region10: #{tpu_custom_call.1} parent=1 // pred_check
      _
    $region11: #{tpu_custom_call.1} parent=1 // pred_check_branch
      %22 = sbr.rel (0) target = $region13
    $region12: #{tpu_custom_call.1} parent=1 // pred_region
      _
    $region13: #{tpu_custom_call.1} parent=1 // pred_fallthru
      _
    // Predicated region
    $region14: #{tpu_custom_call.1} parent=1 // pred_check
      _
    $region15: #{tpu_custom_call.1} parent=1 // pred_check_branch
      %24 = sbr.rel (0) target = $region17
    $region16: #{tpu_custom_call.1} parent=1 // pred_region
      _
    $region17: #{tpu_custom_call.1} parent=1 // pred_fallthru
      _
    // Predicated region
    $region18: #{tpu_custom_call.1} parent=1 // pred_check
      _
    $region19: #{tpu_custom_call.1} parent=1 // pred_check_branch
      %26 = sbr.rel (0) target = $region21
    $region20: #{tpu_custom_call.1} parent=1 // pred_region
      _
    $region21: #{tpu_custom_call.1} parent=1 // pred_fallthru
      _
    // Predicated region
    $region22: #{tpu_custom_call.1} parent=1 // pred_check
      _
    $region23: #{tpu_custom_call.1} parent=1 // pred_check_branch
      %28 = sbr.rel (0) target = $region25
    $region24: #{tpu_custom_call.1} parent=1 // pred_region
      _
    $region25: #{tpu_custom_call.1} parent=1 // pred_fallthru
      _
    // Predicated region
    $region26: #{tpu_custom_call.1} parent=1 // pred_check
      _
    $region27: #{tpu_custom_call.1} parent=1 // pred_check_branch
      %30 = sbr.rel (0) target = $region29
    $region28: #{tpu_custom_call.1} parent=1 // pred_region
      _
    $region29: #{tpu_custom_call.1} parent=1 // pred_fallthru
      _
    // Predicated region
    $region30: #{tpu_custom_call.1} parent=1 // pred_check
      _
    $region31: #{tpu_custom_call.1} parent=1 // pred_check_branch
      %32 = sbr.rel (0) target = $region33
    $region32: #{tpu_custom_call.1} parent=1 // pred_region
      _
    $region33: #{tpu_custom_call.1} parent=1 // pred_fallthru
      _
    // Predicated region
    $region34: #{tpu_custom_call.1} parent=1 // pred_check
      _
    $region35: #{tpu_custom_call.1} parent=1 // pred_check_branch
      %34 = sbr.rel (0) target = $region37
    $region36: #{tpu_custom_call.1} parent=1 // pred_region
      _
    $region37: #{tpu_custom_call.1} parent=1 // pred_fallthru
      _
    // Predicated region
    $region38: #{tpu_custom_call.1} parent=1 // pred_check
      _
    $region39: #{tpu_custom_call.1} parent=1 // pred_check_branch
      %36 = sbr.rel (0) target = $region41
    $region40: #{tpu_custom_call.1} parent=1 // pred_region
      _
    $region41: #{tpu_custom_call.1} parent=1 // pred_fallthru
      _
    // Predicated region
    $region42: #{tpu_custom_call.1} parent=1 // pred_check
      _
    $region43: #{tpu_custom_call.1} parent=1 // pred_check_branch
      %38 = sbr.rel (0) target = $region45
    $region44: #{tpu_custom_call.1} parent=1 // pred_region
      _
    $region45: #{tpu_custom_call.1} parent=1 // pred_fallthru
      _
    %v40 = vld [vmem:[%s0] sm:$0xf]
    %v41 = vld [vmem:[%s1] sm:$0xff]
    %v42 = vld [vmem:[%s1 + $0x8] sm:$0xf]
    %v43 = vld [vmem:[%s1 + $0xc] sm:$0xff]
    %v44 = vld [vmem:[%s1 + $0x14] sm:$0xf]
    %v45 = vld [vmem:[%s2] sm:$0x7]
    %v47 = vlaneseq
    %v48 = vshrl.u32 %v47, 7
    %v49 = vsub.s32 0, %v48
    %v50 = vrot.slane %v45, %v49
    %v51 = vlaneseq
    %v52 = vshrl.u32 %v51, 7
    %v53 = vsub.s32 1, %v52
    %v54 = vrot.slane %v45, %v53
    %v55 = vlaneseq
    %v56 = vshrl.u32 %v55, 7
    %v57 = vsub.s32 2, %v56
    %v58 = vrot.slane %v45, %v57
    %v66 = vunpack.c.l.b16 %v41
    %v67 = vunpack.c.h.b16 %v41
    %v68 = vunpack.c.l.b16 %v42
    %v69 = vunpack.c.l.b16 %v43
    %v70 = vunpack.c.h.b16 %v43
    %v71 = vunpack.c.l.b16 %v44
    %v72 = vpack.c.b16 %v69, %v66
    %v73 = vpack.c.b16 %v70, %v67
    %v74 = vpack.c.b16 %v71, %v68
    %vm78 = vcmask 130048
    %v80 = vsel %vm78, %v40, 0
    %82 = vmatprep.subr.bf16.mxu0 %v73
    %83 = vmatpush1.bf16.msra.mxu0 %v72
    %84 = vmatprep.subr.bf16.mxu0 0
    %85 = vmatpush1.bf16.msra.mxu0 0
    %86 = vmatprep.subr.bf16.mxu0 0
    %87 = vmatpush1.bf16.msra.mxu0 0
    %88 = vmatprep.subr.bf16.mxu0 0
    %89 = vmatpush1.bf16.msra.mxu0 0
    %90 = vmatprep.subr.bf16.mxu0 0
    %91 = vmatpush1.bf16.msra.mxu0 0
    %92 = vmatprep.subr.bf16.mxu0 0
    %93 = vmatpush1.bf16.msra.mxu0 0
    %94 = vmatprep.subr.bf16.mxu0 0
    %95 = vmatpush1.bf16.msra.mxu0 0
    %96 = vmatprep.subr.bf16.mxu0 0
    %97 = vmatpush1.bf16.msra.mxu0 0
    %98 = vmatprep.subr.bf16.mxu0 0
    %99 = vmatpush1.bf16.msra.mxu0 0
    %100 = vmatprep.subr.bf16.mxu0 0
    %101 = vmatpush1.bf16.msra.mxu0 0
    %102 = vmatprep.subr.bf16.mxu0 0
    %103 = vmatpush1.bf16.msra.mxu0 0
    %104 = vmatprep.subr.bf16.mxu0 0
    %105 = vmatpush1.bf16.msra.mxu0 0
    %106 = vmatprep.subr.bf16.mxu0 0
    %107 = vmatpush1.bf16.msra.mxu0 0
    %108 = vmatprep.subr.bf16.mxu0 0
    %109 = vmatpush1.bf16.msra.mxu0 0
    %110 = vmatprep.subr.bf16.mxu0 0
    %111 = vmatpush1.bf16.msra.mxu0 0
    %112 = vmatprep.subr.bf16.mxu0 0
    %113 = vmatpush1.bf16.msra.mxu0 0
    %114 = vmatprep.mubr.bf16.mxu0 0
    %115 = vmatmul.mubr.bf16.gmra.mrb[0].mxu0 %v80
    %v116 = vpop.f32.mrb[0].mxu0
    %v117 = vadd.f32 %v50, %v116
    %v118 = vpop.f32.mrb[0].mxu0
    %v119 = vadd.f32 %v54, %v118
    %v120 = vpop.f32.mrb[0].mxu0
    %v121 = vpop.f32.mrb[0].mxu0
    %122 = vdwg.mxu0
    %123 = vmatprep.subr.bf16.mxu0 0
    %124 = vmatpush1.bf16.msra.mxu0 %v74
    %125 = vmatprep.subr.bf16.mxu0 0
    %126 = vmatpush1.bf16.msra.mxu0 0
    %127 = vmatprep.subr.bf16.mxu0 0
    %128 = vmatpush1.bf16.msra.mxu0 0
    %129 = vmatprep.subr.bf16.mxu0 0
    %130 = vmatpush1.bf16.msra.mxu0 0
    %131 = vmatprep.subr.bf16.mxu0 0
    %132 = vmatpush1.bf16.msra.mxu0 0
    %133 = vmatprep.subr.bf16.mxu0 0
    %134 = vmatpush1.bf16.msra.mxu0 0
    %135 = vmatprep.subr.bf16.mxu0 0
    %136 = vmatpush1.bf16.msra.mxu0 0
    %137 = vmatprep.subr.bf16.mxu0 0
    %138 = vmatpush1.bf16.msra.mxu0 0
    %139 = vmatprep.subr.bf16.mxu0 0
    %140 = vmatpush1.bf16.msra.mxu0 0
    %141 = vmatprep.subr.bf16.mxu0 0
    %142 = vmatpush1.bf16.msra.mxu0 0
    %143 = vmatprep.subr.bf16.mxu0 0
    %144 = vmatpush1.bf16.msra.mxu0 0
    %145 = vmatprep.subr.bf16.mxu0 0
    %146 = vmatpush1.bf16.msra.mxu0 0
    %147 = vmatprep.subr.bf16.mxu0 0
    %148 = vmatpush1.bf16.msra.mxu0 0
    %149 = vmatprep.subr.bf16.mxu0 0
    %150 = vmatpush1.bf16.msra.mxu0 0
    %151 = vmatprep.subr.bf16.mxu0 0
    %152 = vmatpush1.bf16.msra.mxu0 0
    %153 = vmatprep.subr.bf16.mxu0 0
    %154 = vmatpush1.bf16.msra.mxu0 0
    %155 = vmatprep.mubr.bf16.mxu0 0
    %156 = vmatmul.mubr.bf16.gmra.mrb[0].mxu0 %v80
    %v157 = vpop.f32.mrb[0].mxu0
    %v158 = vadd.f32 %v58, %v157
    %v159 = vpop.f32.mrb[0].mxu0
    %v160 = vpop.f32.mrb[0].mxu0
    %v161 = vpop.f32.mrb[0].mxu0
    %162 = vdwg.mxu0
    %v163 = vmax.f32 %v117, 0.0
    %v164 = vmax.f32 %v119, 0.0
    %v165 = vmax.f32 %v158, 0.0
    %v166 = vpack.c.bf16 %v163, %v163
    %v167 = vpack.c.bf16 %v164, %v164
    %v168 = vpack.c.bf16 %v165, %v165
    %v169 = vld [vmem:[%s3] sm:$0xff]
    %v170 = vld [vmem:[%s3 + $0x8] sm:$0xf]
    %v171 = vld [vmem:[%s3 + $0xc] sm:$0xff]
    %v172 = vld [vmem:[%s3 + $0x14] sm:$0xf]
    %v173 = vld [vmem:[%s3 + $0x18] sm:$0xff]
    %v174 = vld [vmem:[%s3 + $0x20] sm:$0xf]
    %v175 = vld [vmem:[%s3 + $0x24] sm:$0xff]
    %v176 = vld [vmem:[%s3 + $0x2c] sm:$0xf]
    %v177 = vld [vmem:[%s3 + $0x30] sm:$0xff]
    %v178 = vld [vmem:[%s3 + $0x38] sm:$0xf]
    %v179 = vld [vmem:[%s3 + $0x3c] sm:$0xff]
    %v180 = vld [vmem:[%s3 + $0x44] sm:$0xf]
    %v181 = vld [vmem:[%s3 + $0x48] sm:$0xff]
    %v182 = vld [vmem:[%s3 + $0x50] sm:$0xf]
    %v183 = vld [vmem:[%s3 + $0x54] sm:$0xff]
    %v184 = vld [vmem:[%s3 + $0x5c] sm:$0xf]
    %v185 = vld [vmem:[%s3 + $0x60] sm:$0xff]
    %v186 = vld [vmem:[%s3 + $0x68] sm:$0xf]
    %v187 = vld [vmem:[%s3 + $0x6c] sm:$0xff]
    %v188 = vld [vmem:[%s3 + $0x74] sm:$0xf]
    %v189 = vld [vmem:[%s3 + $0x78] sm:$0xff]
    %v190 = vld [vmem:[%s3 + $0x80] sm:$0xf]
    %v191 = vld [vmem:[%s3 + $0x84] sm:$0xff]
    %v192 = vld [vmem:[%s3 + $0x8c] sm:$0xf]
    %v193 = vld [vmem:[%s3 + $0x90] sm:$0xff]
    %v194 = vld [vmem:[%s3 + $0x98] sm:$0xf]
    %v195 = vld [vmem:[%s3 + $0x9c] sm:$0xff]
    %v196 = vld [vmem:[%s3 + $0xa4] sm:$0xf]
    %v197 = vld [vmem:[%s3 + $0xa8] sm:$0xff]
    %v198 = vld [vmem:[%s3 + $0xb0] sm:$0xf]
    %v199 = vld [vmem:[%s3 + $0xb4] sm:$0xff]
    %v200 = vld [vmem:[%s3 + $0xbc] sm:$0xf]
    %v201 = vld [vmem:[%s3 + $0xc0] sm:$0xff]
    %v202 = vld [vmem:[%s3 + $0xc8] sm:$0xf]
    %v203 = vld [vmem:[%s3 + $0xcc] sm:$0xff]
    %v204 = vld [vmem:[%s3 + $0xd4] sm:$0xf]
    %v205 = vld [vmem:[%s3 + $0xd8] sm:$0xff]
    %v206 = vld [vmem:[%s3 + $0xe0] sm:$0xf]
    %v207 = vld [vmem:[%s3 + $0xe4] sm:$0xff]
    %v208 = vld [vmem:[%s3 + $0xec] sm:$0xf]
    %v209 = vld [vmem:[%s3 + $0xf0] sm:$0xff]
    %v210 = vld [vmem:[%s3 + $0xf8] sm:$0xf]
    %v211 = vld [vmem:[%s3 + $0xfc] sm:$0xff]
    %v212 = vld [vmem:[%s3 + $0x104] sm:$0xf]
    %v213 = vld [vmem:[%s3 + $0x108] sm:$0xff]
    %v214 = vld [vmem:[%s3 + $0x110] sm:$0xf]
    %v215 = vld [vmem:[%s3 + $0x114] sm:$0xff]
    %v216 = vld [vmem:[%s3 + $0x11c] sm:$0xf]
    %v217 = vld [vmem:[%s3 + $0x120] sm:$0xff]
    %v218 = vld [vmem:[%s3 + $0x128] sm:$0xf]
    %v219 = vld [vmem:[%s3 + $0x12c] sm:$0xff]
    %v220 = vld [vmem:[%s3 + $0x134] sm:$0xf]
    %v221 = vld [vmem:[%s3 + $0x138] sm:$0xff]
    %v222 = vld [vmem:[%s3 + $0x140] sm:$0xf]
    %v223 = vld [vmem:[%s3 + $0x144] sm:$0xff]
    %v224 = vld [vmem:[%s3 + $0x14c] sm:$0xf]
    %v225 = vld [vmem:[%s3 + $0x150] sm:$0xff]
    %v226 = vld [vmem:[%s3 + $0x158] sm:$0xf]
    %v227 = vld [vmem:[%s3 + $0x15c] sm:$0xff]
    %v228 = vld [vmem:[%s3 + $0x164] sm:$0xf]
    %v229 = vld [vmem:[%s3 + $0x168] sm:$0xff]
    %v230 = vld [vmem:[%s3 + $0x170] sm:$0xf]
    %v231 = vld [vmem:[%s3 + $0x174] sm:$0xff]
    %v232 = vld [vmem:[%s3 + $0x17c] sm:$0xf]
    %v233 = vld [vmem:[%s3 + $0x180] sm:$0xff]
    %v234 = vld [vmem:[%s3 + $0x188] sm:$0xf]
    %v235 = vld [vmem:[%s3 + $0x18c] sm:$0xff]
    %v236 = vld [vmem:[%s3 + $0x194] sm:$0xf]
    %v237 = vld [vmem:[%s3 + $0x198] sm:$0xff]
    %v238 = vld [vmem:[%s3 + $0x1a0] sm:$0xf]
    %v239 = vld [vmem:[%s3 + $0x1a4] sm:$0xff]
    %v240 = vld [vmem:[%s3 + $0x1ac] sm:$0xf]
    %v241 = vld [vmem:[%s3 + $0x1b0] sm:$0xff]
    %v242 = vld [vmem:[%s3 + $0x1b8] sm:$0xf]
    %v243 = vld [vmem:[%s3 + $0x1bc] sm:$0xff]
    %v244 = vld [vmem:[%s3 + $0x1c4] sm:$0xf]
    %v245 = vld [vmem:[%s3 + $0x1c8] sm:$0xff]
    %v246 = vld [vmem:[%s3 + $0x1d0] sm:$0xf]
    %v247 = vld [vmem:[%s3 + $0x1d4] sm:$0xff]
    %v248 = vld [vmem:[%s3 + $0x1dc] sm:$0xf]
    %v249 = vld [vmem:[%s4] sm:$0x7]
    %v251 = vlaneseq
    %v252 = vshrl.u32 %v251, 7
    %v253 = vsub.s32 0, %v252
    %v254 = vrot.slane %v249, %v253
    %v255 = vlaneseq
    %v256 = vshrl.u32 %v255, 7
    %v257 = vsub.s32 1, %v256
    %v258 = vrot.slane %v249, %v257
    %v259 = vlaneseq
    %v260 = vshrl.u32 %v259, 7
    %v261 = vsub.s32 2, %v260
    %v262 = vrot.slane %v249, %v261
    %v346 = vunpack.c.l.b16 %v169
    %v347 = vunpack.c.h.b16 %v169
    %v348 = vunpack.c.l.b16 %v170
    %v349 = vunpack.c.l.b16 %v171
    %v350 = vunpack.c.h.b16 %v171
    %v351 = vunpack.c.l.b16 %v172
    %v352 = vunpack.c.l.b16 %v173
    %v353 = vunpack.c.h.b16 %v173
    %v354 = vunpack.c.l.b16 %v174
    %v355 = vunpack.c.l.b16 %v175
    %v356 = vunpack.c.h.b16 %v175
    %v357 = vunpack.c.l.b16 %v176
    %v358 = vunpack.c.l.b16 %v177
    %v359 = vunpack.c.h.b16 %v177
    %v360 = vunpack.c.l.b16 %v178
    %v361 = vunpack.c.l.b16 %v179
    %v362 = vunpack.c.h.b16 %v179
    %v363 = vunpack.c.l.b16 %v180
    %v364 = vunpack.c.l.b16 %v181
    %v365 = vunpack.c.h.b16 %v181
    %v366 = vunpack.c.l.b16 %v182
    %v367 = vunpack.c.l.b16 %v183
    %v368 = vunpack.c.h.b16 %v183
    %v369 = vunpack.c.l.b16 %v184
    %v370 = vunpack.c.l.b16 %v185
    %v371 = vunpack.c.h.b16 %v185
    %v372 = vunpack.c.l.b16 %v186
    %v373 = vunpack.c.l.b16 %v187
    %v374 = vunpack.c.h.b16 %v187
    %v375 = vunpack.c.l.b16 %v188
    %v376 = vunpack.c.l.b16 %v189
    %v377 = vunpack.c.h.b16 %v189
    %v378 = vunpack.c.l.b16 %v190
    %v379 = vunpack.c.l.b16 %v191
    %v380 = vunpack.c.h.b16 %v191
    %v381 = vunpack.c.l.b16 %v192
    %v382 = vunpack.c.l.b16 %v193
    %v383 = vunpack.c.h.b16 %v193
    %v384 = vunpack.c.l.b16 %v194
    %v385 = vunpack.c.l.b16 %v195
    %v386 = vunpack.c.h.b16 %v195
    %v387 = vunpack.c.l.b16 %v196
    %v388 = vunpack.c.l.b16 %v197
    %v389 = vunpack.c.h.b16 %v197
    %v390 = vunpack.c.l.b16 %v198
    %v391 = vunpack.c.l.b16 %v199
    %v392 = vunpack.c.h.b16 %v199
    %v393 = vunpack.c.l.b16 %v200
    %v394 = vunpack.c.l.b16 %v201
    %v395 = vunpack.c.h.b16 %v201
    %v396 = vunpack.c.l.b16 %v202
    %v397 = vunpack.c.l.b16 %v203
    %v398 = vunpack.c.h.b16 %v203
    %v399 = vunpack.c.l.b16 %v204
    %v400 = vunpack.c.l.b16 %v205
    %v401 = vunpack.c.h.b16 %v205
    %v402 = vunpack.c.l.b16 %v206
    %v403 = vunpack.c.l.b16 %v207
    %v404 = vunpack.c.h.b16 %v207
    %v405 = vunpack.c.l.b16 %v208
    %v406 = vunpack.c.l.b16 %v209
    %v407 = vunpack.c.h.b16 %v209
    %v408 = vunpack.c.l.b16 %v210
    %v409 = vunpack.c.l.b16 %v211
    %v410 = vunpack.c.h.b16 %v211
    %v411 = vunpack.c.l.b16 %v212
    %v412 = vunpack.c.l.b16 %v213
    %v413 = vunpack.c.h.b16 %v213
    %v414 = vunpack.c.l.b16 %v214
    %v415 = vunpack.c.l.b16 %v215
    %v416 = vunpack.c.h.b16 %v215
    %v417 = vunpack.c.l.b16 %v216
    %v418 = vunpack.c.l.b16 %v217
    %v419 = vunpack.c.h.b16 %v217
    %v420 = vunpack.c.l.b16 %v218
    %v421 = vunpack.c.l.b16 %v219
    %v422 = vunpack.c.h.b16 %v219
    %v423 = vunpack.c.l.b16 %v220
    %v424 = vunpack.c.l.b16 %v221
    %v425 = vunpack.c.h.b16 %v221
    %v426 = vunpack.c.l.b16 %v222
    %v427 = vunpack.c.l.b16 %v223
    %v428 = vunpack.c.h.b16 %v223
    %v429 = vunpack.c.l.b16 %v224
    %v430 = vunpack.c.l.b16 %v225
    %v431 = vunpack.c.h.b16 %v225
    %v432 = vunpack.c.l.b16 %v226
    %v433 = vunpack.c.l.b16 %v227
    %v434 = vunpack.c.h.b16 %v227
    %v435 = vunpack.c.l.b16 %v228
    %v436 = vunpack.c.l.b16 %v229
    %v437 = vunpack.c.h.b16 %v229
    %v438 = vunpack.c.l.b16 %v230
    %v439 = vunpack.c.l.b16 %v231
    %v440 = vunpack.c.h.b16 %v231
    %v441 = vunpack.c.l.b16 %v232
    %v442 = vunpack.c.l.b16 %v233
    %v443 = vunpack.c.h.b16 %v233
    %v444 = vunpack.c.l.b16 %v234
    %v445 = vunpack.c.l.b16 %v235
    %v446 = vunpack.c.h.b16 %v235
    %v447 = vunpack.c.l.b16 %v236
    %v448 = vunpack.c.l.b16 %v237
    %v449 = vunpack.c.h.b16 %v237
    %v450 = vunpack.c.l.b16 %v238
    %v451 = vunpack.c.l.b16 %v239
    %v452 = vunpack.c.h.b16 %v239
    %v453 = vunpack.c.l.b16 %v240
    %v454 = vunpack.c.l.b16 %v241
    %v455 = vunpack.c.h.b16 %v241
    %v456 = vunpack.c.l.b16 %v242
    %v457 = vunpack.c.l.b16 %v243
    %v458 = vunpack.c.h.b16 %v243
    %v459 = vunpack.c.l.b16 %v244
    %v460 = vunpack.c.l.b16 %v245
    %v461 = vunpack.c.h.b16 %v245
    %v462 = vunpack.c.l.b16 %v246
    %v463 = vunpack.c.l.b16 %v247
    %v464 = vunpack.c.h.b16 %v247
    %v465 = vunpack.c.l.b16 %v248
    %v466 = vpack.c.b16 %v349, %v346
    %v467 = vpack.c.b16 %v350, %v347
    %v468 = vpack.c.b16 %v351, %v348
    %v469 = vpack.c.b16 %v355, %v352
    %v470 = vpack.c.b16 %v356, %v353
    %v471 = vpack.c.b16 %v357, %v354
    %v472 = vpack.c.b16 %v361, %v358
    %v473 = vpack.c.b16 %v362, %v359
    %v474 = vpack.c.b16 %v363, %v360
    %v475 = vpack.c.b16 %v367, %v364
    %v476 = vpack.c.b16 %v368, %v365
    %v477 = vpack.c.b16 %v369, %v366
    %v478 = vpack.c.b16 %v373, %v370
    %v479 = vpack.c.b16 %v374, %v371
    %v480 = vpack.c.b16 %v375, %v372
    %v481 = vpack.c.b16 %v379, %v376
    %v482 = vpack.c.b16 %v380, %v377
    %v483 = vpack.c.b16 %v381, %v378
    %v484 = vpack.c.b16 %v385, %v382
    %v485 = vpack.c.b16 %v386, %v383
    %v486 = vpack.c.b16 %v387, %v384
    %v487 = vpack.c.b16 %v391, %v388
    %v488 = vpack.c.b16 %v392, %v389
    %v489 = vpack.c.b16 %v393, %v390
    %v490 = vpack.c.b16 %v397, %v394
    %v491 = vpack.c.b16 %v398, %v395
    %v492 = vpack.c.b16 %v399, %v396
    %v493 = vpack.c.b16 %v403, %v400
    %v494 = vpack.c.b16 %v404, %v401
    %v495 = vpack.c.b16 %v405, %v402
    %v496 = vpack.c.b16 %v409, %v406
    %v497 = vpack.c.b16 %v410, %v407
    %v498 = vpack.c.b16 %v411, %v408
    %v499 = vpack.c.b16 %v415, %v412
    %v500 = vpack.c.b16 %v416, %v413
    %v501 = vpack.c.b16 %v417, %v414
    %v502 = vpack.c.b16 %v421, %v418
    %v503 = vpack.c.b16 %v422, %v419
    %v504 = vpack.c.b16 %v423, %v420
    %v505 = vpack.c.b16 %v427, %v424
    %v506 = vpack.c.b16 %v428, %v425
    %v507 = vpack.c.b16 %v429, %v426
    %v508 = vpack.c.b16 %v433, %v430
    %v509 = vpack.c.b16 %v434, %v431
    %v510 = vpack.c.b16 %v435, %v432
    %v511 = vpack.c.b16 %v439, %v436
    %v512 = vpack.c.b16 %v440, %v437
    %v513 = vpack.c.b16 %v441, %v438
    %v514 = vpack.c.b16 %v445, %v442
    %v515 = vpack.c.b16 %v446, %v443
    %v516 = vpack.c.b16 %v447, %v444
    %v517 = vpack.c.b16 %v451, %v448
    %v518 = vpack.c.b16 %v452, %v449
    %v519 = vpack.c.b16 %v453, %v450
    %v520 = vpack.c.b16 %v457, %v454
    %v521 = vpack.c.b16 %v458, %v455
    %v522 = vpack.c.b16 %v459, %v456
    %v523 = vpack.c.b16 %v463, %v460
    %v524 = vpack.c.b16 %v464, %v461
    %v525 = vpack.c.b16 %v465, %v462
    %vm586 = vcmask 523264
    %v588 = vsel %vm586, %v168, 0
    %590 = vmatprep.subr.bf16.mxu0 %v467
    %591 = vmatpush1.bf16.msra.mxu0 %v466
    %592 = vmatprep.subr.bf16.mxu0 %v470
    %593 = vmatpush1.bf16.msra.mxu0 %v469
    %594 = vmatprep.subr.bf16.mxu0 %v473
    %595 = vmatpush1.bf16.msra.mxu0 %v472
    %596 = vmatprep.subr.bf16.mxu0 %v476
    %597 = vmatpush1.bf16.msra.mxu0 %v475
    %598 = vmatprep.subr.bf16.mxu0 %v479
    %599 = vmatpush1.bf16.msra.mxu0 %v478
    %600 = vmatprep.subr.bf16.mxu0 %v482
    %601 = vmatpush1.bf16.msra.mxu0 %v481
    %602 = vmatprep.subr.bf16.mxu0 %v485
    %603 = vmatpush1.bf16.msra.mxu0 %v484
    %604 = vmatprep.subr.bf16.mxu0 %v488
    %605 = vmatpush1.bf16.msra.mxu0 %v487
    %606 = vmatprep.subr.bf16.mxu0 %v491
    %607 = vmatpush1.bf16.msra.mxu0 %v490
    %608 = vmatprep.subr.bf16.mxu0 %v494
    %609 = vmatpush1.bf16.msra.mxu0 %v493
    %610 = vmatprep.subr.bf16.mxu0 %v497
    %611 = vmatpush1.bf16.msra.mxu0 %v496
    %612 = vmatprep.subr.bf16.mxu0 %v500
    %613 = vmatpush1.bf16.msra.mxu0 %v499
    %614 = vmatprep.subr.bf16.mxu0 %v503
    %615 = vmatpush1.bf16.msra.mxu0 %v502
    %616 = vmatprep.subr.bf16.mxu0 %v506
    %617 = vmatpush1.bf16.msra.mxu0 %v505
    %618 = vmatprep.subr.bf16.mxu0 %v509
    %619 = vmatpush1.bf16.msra.mxu0 %v508
    %620 = vmatprep.subr.bf16.mxu0 %v512
    %621 = vmatpush1.bf16.msra.mxu0 %v511
    %622 = vmatprep.mubr.bf16.mxu0 %v167
    %623 = vmatmul.mubr.bf16.gmra.mrb[0].mxu0 %v166
    %v624 = vpop.f32.mrb[0].mxu0
    %v625 = vadd.f32 %v254, %v624
    %v626 = vpop.f32.mrb[0].mxu0
    %v627 = vadd.f32 %v258, %v626
    %v628 = vpop.f32.mrb[0].mxu0
    %v629 = vpop.f32.mrb[0].mxu0
    %630 = vdwg.mxu0
    %631 = vmatprep.subr.bf16.mxu0 %v515
    %632 = vmatpush1.bf16.msra.mxu0 %v514
    %633 = vmatprep.subr.bf16.mxu0 %v518
    %634 = vmatpush1.bf16.msra.mxu0 %v517
    %635 = vmatprep.subr.bf16.mxu0 %v521
    %636 = vmatpush1.bf16.msra.mxu0 %v520
    %637 = vmatprep.subr.bf16.mxu0 %v524
    %638 = vmatpush1.bf16.msra.mxu0 %v523
    %639 = vmatprep.subr.bf16.mxu0 0
    %640 = vmatpush1.bf16.msra.mxu0 0
    %641 = vmatprep.subr.bf16.mxu0 0
    %642 = vmatpush1.bf16.msra.mxu0 0
    %643 = vmatprep.subr.bf16.mxu0 0
    %644 = vmatpush1.bf16.msra.mxu0 0
    %645 = vmatprep.subr.bf16.mxu0 0
    %646 = vmatpush1.bf16.msra.mxu0 0
    %647 = vmatprep.subr.bf16.mxu0 0
    %648 = vmatpush1.bf16.msra.mxu0 0
    %649 = vmatprep.subr.bf16.mxu0 0
    %650 = vmatpush1.bf16.msra.mxu0 0
    %651 = vmatprep.subr.bf16.mxu0 0
    %652 = vmatpush1.bf16.msra.mxu0 0
    %653 = vmatprep.subr.bf16.mxu0 0
    %654 = vmatpush1.bf16.msra.mxu0 0
    %655 = vmatprep.subr.bf16.mxu0 0
    %656 = vmatpush1.bf16.msra.mxu0 0
    %657 = vmatprep.subr.bf16.mxu0 0
    %658 = vmatpush1.bf16.msra.mxu0 0
    %659 = vmatprep.subr.bf16.mxu0 0
    %660 = vmatpush1.bf16.msra.mxu0 0
    %661 = vmatprep.subr.bf16.mxu0 0
    %662 = vmatpush1.bf16.msra.mxu0 0
    %663 = vmatprep.mubr.bf16.mxu0 0
    %664 = vmatmul.mubr.bf16.gmra.mrb[0].mxu0 %v588
    %v665 = vpop.f32.mrb[0].mxu0
    %v666 = vadd.f32 %v625, %v665
    %v667 = vpop.f32.mrb[0].mxu0
    %v668 = vadd.f32 %v627, %v667
    %v669 = vpop.f32.mrb[0].mxu0
    %v670 = vpop.f32.mrb[0].mxu0
    %671 = vdwg.mxu0
    %672 = vmatprep.subr.bf16.mxu0 0
    %673 = vmatpush1.bf16.msra.mxu0 %v468
    %674 = vmatprep.subr.bf16.mxu0 0
    %675 = vmatpush1.bf16.msra.mxu0 %v471
    %676 = vmatprep.subr.bf16.mxu0 0
    %677 = vmatpush1.bf16.msra.mxu0 %v474
    %678 = vmatprep.subr.bf16.mxu0 0
    %679 = vmatpush1.bf16.msra.mxu0 %v477
    %680 = vmatprep.subr.bf16.mxu0 0
    %681 = vmatpush1.bf16.msra.mxu0 %v480
    %682 = vmatprep.subr.bf16.mxu0 0
    %683 = vmatpush1.bf16.msra.mxu0 %v483
    %684 = vmatprep.subr.bf16.mxu0 0
    %685 = vmatpush1.bf16.msra.mxu0 %v486
    %686 = vmatprep.subr.bf16.mxu0 0
    %687 = vmatpush1.bf16.msra.mxu0 %v489
    %688 = vmatprep.subr.bf16.mxu0 0
    %689 = vmatpush1.bf16.msra.mxu0 %v492
    %690 = vmatprep.subr.bf16.mxu0 0
    %691 = vmatpush1.bf16.msra.mxu0 %v495
    %692 = vmatprep.subr.bf16.mxu0 0
    %693 = vmatpush1.bf16.msra.mxu0 %v498
    %694 = vmatprep.subr.bf16.mxu0 0
    %695 = vmatpush1.bf16.msra.mxu0 %v501
    %696 = vmatprep.subr.bf16.mxu0 0
    %697 = vmatpush1.bf16.msra.mxu0 %v504
    %698 = vmatprep.subr.bf16.mxu0 0
    %699 = vmatpush1.bf16.msra.mxu0 %v507
    %700 = vmatprep.subr.bf16.mxu0 0
    %701 = vmatpush1.bf16.msra.mxu0 %v510
    %702 = vmatprep.subr.bf16.mxu0 0
    %703 = vmatpush1.bf16.msra.mxu0 %v513
    %704 = vmatprep.mubr.bf16.mxu0 %v167
    %705 = vmatmul.mubr.bf16.gmra.mrb[0].mxu0 %v166
    %v706 = vpop.f32.mrb[0].mxu0
    %v707 = vadd.f32 %v262, %v706
    %v708 = vpop.f32.mrb[0].mxu0
    %v709 = vpop.f32.mrb[0].mxu0
    %v710 = vpop.f32.mrb[0].mxu0
    %711 = vdwg.mxu0
    %712 = vmatprep.subr.bf16.mxu0 0
    %713 = vmatpush1.bf16.msra.mxu0 %v516
    %714 = vmatprep.subr.bf16.mxu0 0
    %715 = vmatpush1.bf16.msra.mxu0 %v519
    %716 = vmatprep.subr.bf16.mxu0 0
    %717 = vmatpush1.bf16.msra.mxu0 %v522
    %718 = vmatprep.subr.bf16.mxu0 0
    %719 = vmatpush1.bf16.msra.mxu0 %v525
    %720 = vmatprep.subr.bf16.mxu0 0
    %721 = vmatpush1.bf16.msra.mxu0 0
    %722 = vmatprep.subr.bf16.mxu0 0
    %723 = vmatpush1.bf16.msra.mxu0 0
    %724 = vmatprep.subr.bf16.mxu0 0
    %725 = vmatpush1.bf16.msra.mxu0 0
    %726 = vmatprep.subr.bf16.mxu0 0
    %727 = vmatpush1.bf16.msra.mxu0 0
    %728 = vmatprep.subr.bf16.mxu0 0
    %729 = vmatpush1.bf16.msra.mxu0 0
    %730 = vmatprep.subr.bf16.mxu0 0
    %731 = vmatpush1.bf16.msra.mxu0 0
    %732 = vmatprep.subr.bf16.mxu0 0
    %733 = vmatpush1.bf16.msra.mxu0 0
    %734 = vmatprep.subr.bf16.mxu0 0
    %735 = vmatpush1.bf16.msra.mxu0 0
    %736 = vmatprep.subr.bf16.mxu0 0
    %737 = vmatpush1.bf16.msra.mxu0 0
    %738 = vmatprep.subr.bf16.mxu0 0
    %739 = vmatpush1.bf16.msra.mxu0 0
    %740 = vmatprep.subr.bf16.mxu0 0
    %741 = vmatpush1.bf16.msra.mxu0 0
    %742 = vmatprep.subr.bf16.mxu0 0
    %743 = vmatpush1.bf16.msra.mxu0 0
    %744 = vmatprep.mubr.bf16.mxu0 0
    %745 = vmatmul.mubr.bf16.gmra.mrb[0].mxu0 %v588
    %v746 = vpop.f32.mrb[0].mxu0
    %v747 = vadd.f32 %v707, %v746
    %v748 = vpop.f32.mrb[0].mxu0
    %v749 = vpop.f32.mrb[0].mxu0
    %v750 = vpop.f32.mrb[0].mxu0
    %751 = vdwg.mxu0
    %v752 = vmax.f32 %v666, 0.0
    %v753 = vmax.f32 %v668, 0.0
    %v754 = vmax.f32 %v747, 0.0
    %v755 = vpack.c.bf16 %v752, %v752
    %v756 = vpack.c.bf16 %v753, %v753
    %v757 = vpack.c.bf16 %v754, %v754
    %v758 = vld [vmem:[%s5] sm:$0xff]
    %v759 = vld [vmem:[%s5 + $0x8] sm:$0xff]
    %v760 = vld [vmem:[%s5 + $0x10] sm:$0xff]
    %v761 = vld [vmem:[%s5 + $0x18] sm:$0xff]
    %v762 = vld [vmem:[%s5 + $0x20] sm:$0xff]
    %v763 = vld [vmem:[%s5 + $0x28] sm:$0xff]
    %v764 = vld [vmem:[%s5 + $0x30] sm:$0xff]
    %v765 = vld [vmem:[%s5 + $0x38] sm:$0xff]
    %v766 = vld [vmem:[%s5 + $0x40] sm:$0xff]
    %v767 = vld [vmem:[%s5 + $0x48] sm:$0xff]
    %v768 = vld [vmem:[%s5 + $0x50] sm:$0xff]
    %v769 = vld [vmem:[%s5 + $0x58] sm:$0xff]
    %v770 = vld [vmem:[%s5 + $0x60] sm:$0xff]
    %v771 = vld [vmem:[%s5 + $0x68] sm:$0xff]
    %v772 = vld [vmem:[%s5 + $0x70] sm:$0xff]
    %v773 = vld [vmem:[%s5 + $0x78] sm:$0xff]
    %v774 = vld [vmem:[%s5 + $0x80] sm:$0xff]
    %v775 = vld [vmem:[%s5 + $0x88] sm:$0xff]
    %v776 = vld [vmem:[%s5 + $0x90] sm:$0xff]
    %v777 = vld [vmem:[%s5 + $0x98] sm:$0xff]
    %v778 = vld [vmem:[%s5 + $0xa0] sm:$0xff]
    %v779 = vld [vmem:[%s5 + $0xa8] sm:$0xff]
    %v780 = vld [vmem:[%s5 + $0xb0] sm:$0xff]
    %v781 = vld [vmem:[%s5 + $0xb8] sm:$0xff]
    %v782 = vld [vmem:[%s5 + $0xc0] sm:$0xff]
    %v783 = vld [vmem:[%s5 + $0xc8] sm:$0xff]
    %v784 = vld [vmem:[%s5 + $0xd0] sm:$0xff]
    %v785 = vld [vmem:[%s5 + $0xd8] sm:$0xff]
    %v786 = vld [vmem:[%s5 + $0xe0] sm:$0xff]
    %v787 = vld [vmem:[%s5 + $0xe8] sm:$0xff]
    %v788 = vld [vmem:[%s5 + $0xf0] sm:$0xff]
    %v789 = vld [vmem:[%s5 + $0xf8] sm:$0xff]
    %v790 = vld [vmem:[%s5 + $0x100] sm:$0xff]
    %v791 = vld [vmem:[%s5 + $0x108] sm:$0xff]
    %v792 = vld [vmem:[%s5 + $0x110] sm:$0xff]
    %v793 = vld [vmem:[%s5 + $0x118] sm:$0xff]
    %v794 = vld [vmem:[%s5 + $0x120] sm:$0xff]
    %v795 = vld [vmem:[%s5 + $0x128] sm:$0xff]
    %v796 = vld [vmem:[%s5 + $0x130] sm:$0xff]
    %v797 = vld [vmem:[%s5 + $0x138] sm:$0xff]
    %v798 = vld [vmem:[%s6] sm:$0x3]
    %v800 = vlaneseq
    %v801 = vshrl.u32 %v800, 7
    %v802 = vsub.s32 0, %v801
    %v803 = vrot.slane %v798, %v802
    %v804 = vlaneseq
    %v805 = vshrl.u32 %v804, 7
    %v806 = vsub.s32 1, %v805
    %v807 = vrot.slane %v798, %v806
    %v850 = vunpack.c.l.b16 %v758
    %v851 = vunpack.c.h.b16 %v758
    %v852 = vunpack.c.l.b16 %v759
    %v853 = vunpack.c.h.b16 %v759
    %v854 = vunpack.c.l.b16 %v760
    %v855 = vunpack.c.h.b16 %v760
    %v856 = vunpack.c.l.b16 %v761
    %v857 = vunpack.c.h.b16 %v761
    %v858 = vunpack.c.l.b16 %v762
    %v859 = vunpack.c.h.b16 %v762
    %v860 = vunpack.c.l.b16 %v763
    %v861 = vunpack.c.h.b16 %v763
    %v862 = vunpack.c.l.b16 %v764
    %v863 = vunpack.c.h.b16 %v764
    %v864 = vunpack.c.l.b16 %v765
    %v865 = vunpack.c.h.b16 %v765
    %v866 = vunpack.c.l.b16 %v766
    %v867 = vunpack.c.h.b16 %v766
    %v868 = vunpack.c.l.b16 %v767
    %v869 = vunpack.c.h.b16 %v767
    %v870 = vunpack.c.l.b16 %v768
    %v871 = vunpack.c.h.b16 %v768
    %v872 = vunpack.c.l.b16 %v769
    %v873 = vunpack.c.h.b16 %v769
    %v874 = vunpack.c.l.b16 %v770
    %v875 = vunpack.c.h.b16 %v770
    %v876 = vunpack.c.l.b16 %v771
    %v877 = vunpack.c.h.b16 %v771
    %v878 = vunpack.c.l.b16 %v772
    %v879 = vunpack.c.h.b16 %v772
    %v880 = vunpack.c.l.b16 %v773
    %v881 = vunpack.c.h.b16 %v773
    %v882 = vunpack.c.l.b16 %v774
    %v883 = vunpack.c.h.b16 %v774
    %v884 = vunpack.c.l.b16 %v775
    %v885 = vunpack.c.h.b16 %v775
    %v886 = vunpack.c.l.b16 %v776
    %v887 = vunpack.c.h.b16 %v776
    %v888 = vunpack.c.l.b16 %v777
    %v889 = vunpack.c.h.b16 %v777
    %v890 = vunpack.c.l.b16 %v778
    %v891 = vunpack.c.h.b16 %v778
    %v892 = vunpack.c.l.b16 %v779
    %v893 = vunpack.c.h.b16 %v779
    %v894 = vunpack.c.l.b16 %v780
    %v895 = vunpack.c.h.b16 %v780
    %v896 = vunpack.c.l.b16 %v781
    %v897 = vunpack.c.h.b16 %v781
    %v898 = vunpack.c.l.b16 %v782
    %v899 = vunpack.c.h.b16 %v782
    %v900 = vunpack.c.l.b16 %v783
    %v901 = vunpack.c.h.b16 %v783
    %v902 = vunpack.c.l.b16 %v784
    %v903 = vunpack.c.h.b16 %v784
    %v904 = vunpack.c.l.b16 %v785
    %v905 = vunpack.c.h.b16 %v785
    %v906 = vunpack.c.l.b16 %v786
    %v907 = vunpack.c.h.b16 %v786
    %v908 = vunpack.c.l.b16 %v787
    %v909 = vunpack.c.h.b16 %v787
    %v910 = vunpack.c.l.b16 %v788
    %v911 = vunpack.c.h.b16 %v788
    %v912 = vunpack.c.l.b16 %v789
    %v913 = vunpack.c.h.b16 %v789
    %v914 = vunpack.c.l.b16 %v790
    %v915 = vunpack.c.h.b16 %v790
    %v916 = vunpack.c.l.b16 %v791
    %v917 = vunpack.c.h.b16 %v791
    %v918 = vunpack.c.l.b16 %v792
    %v919 = vunpack.c.h.b16 %v792
    %v920 = vunpack.c.l.b16 %v793
    %v921 = vunpack.c.h.b16 %v793
    %v922 = vunpack.c.l.b16 %v794
    %v923 = vunpack.c.h.b16 %v794
    %v924 = vunpack.c.l.b16 %v795
    %v925 = vunpack.c.h.b16 %v795
    %v926 = vunpack.c.l.b16 %v796
    %v927 = vunpack.c.h.b16 %v796
    %v928 = vunpack.c.l.b16 %v797
    %v929 = vunpack.c.h.b16 %v797
    %v930 = vpack.c.b16 %v852, %v850
    %v931 = vpack.c.b16 %v853, %v851
    %v932 = vpack.c.b16 %v856, %v854
    %v933 = vpack.c.b16 %v857, %v855
    %v934 = vpack.c.b16 %v860, %v858
    %v935 = vpack.c.b16 %v861, %v859
    %v936 = vpack.c.b16 %v864, %v862
    %v937 = vpack.c.b16 %v865, %v863
    %v938 = vpack.c.b16 %v868, %v866
    %v939 = vpack.c.b16 %v869, %v867
    %v940 = vpack.c.b16 %v872, %v870
    %v941 = vpack.c.b16 %v873, %v871
    %v942 = vpack.c.b16 %v876, %v874
    %v943 = vpack.c.b16 %v877, %v875
    %v944 = vpack.c.b16 %v880, %v878
    %v945 = vpack.c.b16 %v881, %v879
    %v946 = vpack.c.b16 %v884, %v882
    %v947 = vpack.c.b16 %v885, %v883
    %v948 = vpack.c.b16 %v888, %v886
    %v949 = vpack.c.b16 %v889, %v887
    %v950 = vpack.c.b16 %v892, %v890
    %v951 = vpack.c.b16 %v893, %v891
    %v952 = vpack.c.b16 %v896, %v894
    %v953 = vpack.c.b16 %v897, %v895
    %v954 = vpack.c.b16 %v900, %v898
    %v955 = vpack.c.b16 %v901, %v899
    %v956 = vpack.c.b16 %v904, %v902
    %v957 = vpack.c.b16 %v905, %v903
    %v958 = vpack.c.b16 %v908, %v906
    %v959 = vpack.c.b16 %v909, %v907
    %v960 = vpack.c.b16 %v912, %v910
    %v961 = vpack.c.b16 %v913, %v911
    %v962 = vpack.c.b16 %v916, %v914
    %v963 = vpack.c.b16 %v917, %v915
    %v964 = vpack.c.b16 %v920, %v918
    %v965 = vpack.c.b16 %v921, %v919
    %v966 = vpack.c.b16 %v924, %v922
    %v967 = vpack.c.b16 %v925, %v923
    %v968 = vpack.c.b16 %v928, %v926
    %v969 = vpack.c.b16 %v929, %v927
    %v1011 = vsel %vm586, %v757, 0
    %1013 = vmatprep.subr.bf16.mxu0 %v931
    %1014 = vmatpush1.bf16.msra.mxu0 %v930
    %1015 = vmatprep.subr.bf16.mxu0 %v933
    %1016 = vmatpush1.bf16.msra.mxu0 %v932
    %1017 = vmatprep.subr.bf16.mxu0 %v935
    %1018 = vmatpush1.bf16.msra.mxu0 %v934
    %1019 = vmatprep.subr.bf16.mxu0 %v937
    %1020 = vmatpush1.bf16.msra.mxu0 %v936
    %1021 = vmatprep.subr.bf16.mxu0 %v939
    %1022 = vmatpush1.bf16.msra.mxu0 %v938
    %1023 = vmatprep.subr.bf16.mxu0 %v941
    %1024 = vmatpush1.bf16.msra.mxu0 %v940
    %1025 = vmatprep.subr.bf16.mxu0 %v943
    %1026 = vmatpush1.bf16.msra.mxu0 %v942
    %1027 = vmatprep.subr.bf16.mxu0 %v945
    %1028 = vmatpush1.bf16.msra.mxu0 %v944
    %1029 = vmatprep.subr.bf16.mxu0 %v947
    %1030 = vmatpush1.bf16.msra.mxu0 %v946
    %1031 = vmatprep.subr.bf16.mxu0 %v949
    %1032 = vmatpush1.bf16.msra.mxu0 %v948
    %1033 = vmatprep.subr.bf16.mxu0 %v951
    %1034 = vmatpush1.bf16.msra.mxu0 %v950
    %1035 = vmatprep.subr.bf16.mxu0 %v953
    %1036 = vmatpush1.bf16.msra.mxu0 %v952
    %1037 = vmatprep.subr.bf16.mxu0 %v955
    %1038 = vmatpush1.bf16.msra.mxu0 %v954
    %1039 = vmatprep.subr.bf16.mxu0 %v957
    %1040 = vmatpush1.bf16.msra.mxu0 %v956
    %1041 = vmatprep.subr.bf16.mxu0 %v959
    %1042 = vmatpush1.bf16.msra.mxu0 %v958
    %1043 = vmatprep.subr.bf16.mxu0 %v961
    %1044 = vmatpush1.bf16.msra.mxu0 %v960
    %1045 = vmatprep.mubr.bf16.mxu0 %v756
    %1046 = vmatmul.mubr.bf16.gmra.mrb[0].mxu0 %v755
    %v1047 = vpop.f32.mrb[0].mxu0
    %v1048 = vadd.f32 %v803, %v1047
    %v1049 = vpop.f32.mrb[0].mxu0
    %v1050 = vadd.f32 %v807, %v1049
    %v1051 = vpop.f32.mrb[0].mxu0
    %v1052 = vpop.f32.mrb[0].mxu0
    %1053 = vdwg.mxu0
    %1054 = vmatprep.subr.bf16.mxu0 %v963
    %1055 = vmatpush1.bf16.msra.mxu0 %v962
    %1056 = vmatprep.subr.bf16.mxu0 %v965
    %1057 = vmatpush1.bf16.msra.mxu0 %v964
    %1058 = vmatprep.subr.bf16.mxu0 %v967
    %1059 = vmatpush1.bf16.msra.mxu0 %v966
    %1060 = vmatprep.subr.bf16.mxu0 %v969
    %1061 = vmatpush1.bf16.msra.mxu0 %v968
    %1062 = vmatprep.subr.bf16.mxu0 0
    %1063 = vmatpush1.bf16.msra.mxu0 0
    %1064 = vmatprep.subr.bf16.mxu0 0
    %1065 = vmatpush1.bf16.msra.mxu0 0
    %1066 = vmatprep.subr.bf16.mxu0 0
    %1067 = vmatpush1.bf16.msra.mxu0 0
    %1068 = vmatprep.subr.bf16.mxu0 0
    %1069 = vmatpush1.bf16.msra.mxu0 0
    %1070 = vmatprep.subr.bf16.mxu0 0
    %1071 = vmatpush1.bf16.msra.mxu0 0
    %1072 = vmatprep.subr.bf16.mxu0 0
    %1073 = vmatpush1.bf16.msra.mxu0 0
    %1074 = vmatprep.subr.bf16.mxu0 0
    %1075 = vmatpush1.bf16.msra.mxu0 0
    %1076 = vmatprep.subr.bf16.mxu0 0
    %1077 = vmatpush1.bf16.msra.mxu0 0
    %1078 = vmatprep.subr.bf16.mxu0 0
    %1079 = vmatpush1.bf16.msra.mxu0 0
    %1080 = vmatprep.subr.bf16.mxu0 0
    %1081 = vmatpush1.bf16.msra.mxu0 0
    %1082 = vmatprep.subr.bf16.mxu0 0
    %1083 = vmatpush1.bf16.msra.mxu0 0
    %1084 = vmatprep.subr.bf16.mxu0 0
    %1085 = vmatpush1.bf16.msra.mxu0 0
    %1086 = vmatprep.mubr.bf16.mxu0 0
    %1087 = vmatmul.mubr.bf16.gmra.mrb[0].mxu0 %v1011
    %v1088 = vpop.f32.mrb[0].mxu0
    %v1089 = vadd.f32 %v1048, %v1088
    %v1090 = vpop.f32.mrb[0].mxu0
    %v1091 = vadd.f32 %v1050, %v1090
    %v1092 = vpop.f32.mrb[0].mxu0
    %v1093 = vpop.f32.mrb[0].mxu0
    %1094 = vdwg.mxu0
    %v1095 = vmax.f32 %v1089, 0.0
    %v1096 = vmax.f32 %v1091, 0.0
    %v1097 = vpack.c.bf16 %v1095, %v1095
    %v1098 = vpack.c.bf16 %v1096, %v1096
    %v1099 = vld [vmem:[%s7] sm:$0xf]
    %v1100 = vld [vmem:[%s7 + $0x4] sm:$0xf]
    %v1101 = vld [vmem:[%s7 + $0x8] sm:$0xf]
    %v1102 = vld [vmem:[%s7 + $0xc] sm:$0xf]
    %v1103 = vld [vmem:[%s7 + $0x10] sm:$0xf]
    %v1104 = vld [vmem:[%s7 + $0x14] sm:$0xf]
    %v1105 = vld [vmem:[%s7 + $0x18] sm:$0xf]
    %v1106 = vld [vmem:[%s7 + $0x1c] sm:$0xf]
    %v1107 = vld [vmem:[%s7 + $0x20] sm:$0xf]
    %v1108 = vld [vmem:[%s7 + $0x24] sm:$0xf]
    %v1109 = vld [vmem:[%s7 + $0x28] sm:$0xf]
    %v1110 = vld [vmem:[%s7 + $0x2c] sm:$0xf]
    %v1111 = vld [vmem:[%s7 + $0x30] sm:$0xf]
    %v1112 = vld [vmem:[%s7 + $0x34] sm:$0xf]
    %v1113 = vld [vmem:[%s7 + $0x38] sm:$0xf]
    %v1114 = vld [vmem:[%s7 + $0x3c] sm:$0xf]
    %v1115 = vld [vmem:[%s7 + $0x40] sm:$0xf]
    %v1116 = vld [vmem:[%s7 + $0x44] sm:$0xf]
    %v1117 = vld [vmem:[%s7 + $0x48] sm:$0xf]
    %v1118 = vld [vmem:[%s7 + $0x4c] sm:$0xf]
    %v1119 = vld [vmem:[%s8] sm:$0x1]
    %v1121 = vlaneseq
    %v1122 = vshrl.u32 %v1121, 7
    %v1123 = vsub.s32 0, %v1122
    %v1124 = vrot.slane %v1119, %v1123
    %v1146 = vunpack.c.l.b16 %v1099
    %v1147 = vunpack.c.l.b16 %v1100
    %v1148 = vunpack.c.l.b16 %v1101
    %v1149 = vunpack.c.l.b16 %v1102
    %v1150 = vunpack.c.l.b16 %v1103
    %v1151 = vunpack.c.l.b16 %v1104
    %v1152 = vunpack.c.l.b16 %v1105
    %v1153 = vunpack.c.l.b16 %v1106
    %v1154 = vunpack.c.l.b16 %v1107
    %v1155 = vunpack.c.l.b16 %v1108
    %v1156 = vunpack.c.l.b16 %v1109
    %v1157 = vunpack.c.l.b16 %v1110
    %v1158 = vunpack.c.l.b16 %v1111
    %v1159 = vunpack.c.l.b16 %v1112
    %v1160 = vunpack.c.l.b16 %v1113
    %v1161 = vunpack.c.l.b16 %v1114
    %v1162 = vunpack.c.l.b16 %v1115
    %v1163 = vunpack.c.l.b16 %v1116
    %v1164 = vunpack.c.l.b16 %v1117
    %v1165 = vunpack.c.l.b16 %v1118
    %v1166 = vpack.c.b16 %v1147, %v1146
    %v1167 = vpack.c.b16 %v1149, %v1148
    %v1168 = vpack.c.b16 %v1151, %v1150
    %v1169 = vpack.c.b16 %v1153, %v1152
    %v1170 = vpack.c.b16 %v1155, %v1154
    %v1171 = vpack.c.b16 %v1157, %v1156
    %v1172 = vpack.c.b16 %v1159, %v1158
    %v1173 = vpack.c.b16 %v1161, %v1160
    %v1174 = vpack.c.b16 %v1163, %v1162
    %v1175 = vpack.c.b16 %v1165, %v1164
    %vm1186 = vcmask 261120
    %v1188 = vsel %vm1186, %v1098, 0
    %1190 = vmatprep.subr.bf16.mxu0 0
    %1191 = vmatpush1.bf16.msra.mxu0 %v1166
    %1192 = vmatprep.subr.bf16.mxu0 0
    %1193 = vmatpush1.bf16.msra.mxu0 %v1167
    %1194 = vmatprep.subr.bf16.mxu0 0
    %1195 = vmatpush1.bf16.msra.mxu0 %v1168
    %1196 = vmatprep.subr.bf16.mxu0 0
    %1197 = vmatpush1.bf16.msra.mxu0 %v1169
    %1198 = vmatprep.subr.bf16.mxu0 0
    %1199 = vmatpush1.bf16.msra.mxu0 %v1170
    %1200 = vmatprep.subr.bf16.mxu0 0
    %1201 = vmatpush1.bf16.msra.mxu0 %v1171
    %1202 = vmatprep.subr.bf16.mxu0 0
    %1203 = vmatpush1.bf16.msra.mxu0 %v1172
    %1204 = vmatprep.subr.bf16.mxu0 0
    %1205 = vmatpush1.bf16.msra.mxu0 %v1173
    %1206 = vmatprep.subr.bf16.mxu0 0
    %1207 = vmatpush1.bf16.msra.mxu0 %v1174
    %1208 = vmatprep.subr.bf16.mxu0 0
    %1209 = vmatpush1.bf16.msra.mxu0 %v1175
    %1210 = vmatprep.subr.bf16.mxu0 0
    %1211 = vmatpush1.bf16.msra.mxu0 0
    %1212 = vmatprep.subr.bf16.mxu0 0
    %1213 = vmatpush1.bf16.msra.mxu0 0
    %1214 = vmatprep.subr.bf16.mxu0 0
    %1215 = vmatpush1.bf16.msra.mxu0 0
    %1216 = vmatprep.subr.bf16.mxu0 0
    %1217 = vmatpush1.bf16.msra.mxu0 0
    %1218 = vmatprep.subr.bf16.mxu0 0
    %1219 = vmatpush1.bf16.msra.mxu0 0
    %1220 = vmatprep.subr.bf16.mxu0 0
    %1221 = vmatpush1.bf16.msra.mxu0 0
    %1222 = vmatprep.mubr.bf16.mxu0 %v1188
    %1223 = vmatmul.mubr.bf16.gmra.mrb[0].mxu0 %v1097
    %v1224 = vpop.f32.mrb[0].mxu0
    %v1225 = vadd.f32 %v1124, %v1224
    %v1226 = vpop.f32.mrb[0].mxu0
    %v1227 = vpop.f32.mrb[0].mxu0
    %v1228 = vpop.f32.mrb[0].mxu0
    %1229 = vdwg.mxu0
    %v1230 = vmax.f32 %v1225, 0.0
    %v1231 = vld [vmem:[%s9] sm:$0xf]
    %v1232 = vpack.c.bf16 %v1230, %v1230
    %v1233 = vld [vmem:[%s10] sm:$0xff]
    %1235 = vset.pattern.permute.xlu0 0
    %1236 = vperm.xlu0 %1235, %v1233
    %v1237 = vpop.permute.xlu0 %1236
    %v1240 = vsel %vm78, %v1231, 0
    %v1243 = vsel %vm78, %v1232, 0
    %1245 = vmatprep.subr.bf16.mxu0 0
    %1246 = vmatpush1.bf16.xpose.msra.mxu0 %v1243
    %1247 = vmatprep.subr.bf16.mxu0 0
    %1248 = vmatpush1.bf16.xpose.msra.mxu0 0
    %1249 = vmatprep.subr.bf16.mxu0 0
    %1250 = vmatpush1.bf16.xpose.msra.mxu0 0
    %1251 = vmatprep.subr.bf16.mxu0 0
    %1252 = vmatpush1.bf16.xpose.msra.mxu0 0
    %1253 = vmatprep.subr.bf16.mxu0 0
    %1254 = vmatpush1.bf16.xpose.msra.mxu0 0
    %1255 = vmatprep.subr.bf16.mxu0 0
    %1256 = vmatpush1.bf16.xpose.msra.mxu0 0
    %1257 = vmatprep.subr.bf16.mxu0 0
    %1258 = vmatpush1.bf16.xpose.msra.mxu0 0
    %1259 = vmatprep.subr.bf16.mxu0 0
    %1260 = vmatpush1.bf16.xpose.msra.mxu0 0
    %1261 = vmatprep.subr.bf16.mxu0 0
    %1262 = vmatpush1.bf16.xpose.msra.mxu0 0
    %1263 = vmatprep.subr.bf16.mxu0 0
    %1264 = vmatpush1.bf16.xpose.msra.mxu0 0
    %1265 = vmatprep.subr.bf16.mxu0 0
    %1266 = vmatpush1.bf16.xpose.msra.mxu0 0
    %1267 = vmatprep.subr.bf16.mxu0 0
    %1268 = vmatpush1.bf16.xpose.msra.mxu0 0
    %1269 = vmatprep.subr.bf16.mxu0 0
    %1270 = vmatpush1.bf16.xpose.msra.mxu0 0
    %1271 = vmatprep.subr.bf16.mxu0 0
    %1272 = vmatpush1.bf16.xpose.msra.mxu0 0
    %1273 = vmatprep.subr.bf16.mxu0 0
    %1274 = vmatpush1.bf16.xpose.msra.mxu0 0
    %1275 = vmatprep.subr.bf16.mxu0 0
    %1276 = vmatpush1.bf16.xpose.msra.mxu0 0
    %1277 = vmatprep.mubr.bf16.mxu0 0
    %1278 = vmatmul.mubr.bf16.gmra.mrb[0].mxu0 %v1240
    %v1279 = vpop.f32.mrb[0].mxu0
    %v1280 = vadd.f32 %v1237, %v1279
    %v1281 = vpop.f32.mrb[0].mxu0
    %v1282 = vpop.f32.mrb[0].mxu0
    %v1283 = vpop.f32.mrb[0].mxu0
    %1284 = vdwg.mxu0
    %v1285 = vxor.u32 %v1280, 2147483648
    %v1286 = vmul.f32 %v1285, 1.442695
    %v1287 = vpow.pop %v1286
    %v1288 = vadd.f32 %v1287, 1.0
    %v1289 = vrcp.pop %v1288
    %v1290 = vmul.f32 1.0, %v1289
    %vm1291 = vcmask 64512
    %1292 = vst.msk [vmem:[#allocation2] sm:$0xff] %vm1291, %v1290
    // Predicated region
    $region46: #{tpu_custom_call.1} parent=1 // pred_check
      _
    $region47: #{tpu_custom_call.1} parent=1 // pred_check_branch
      %1294 = sbr.rel (0) target = $region49
    $region48: #{tpu_custom_call.1} parent=1 // pred_region
      %s1296 = ssub.s32 128, 128
      %1297 = vsyncadd [#allocation3], %s1296
      %s1299 = sshll.u32 [#allocation2], 4
      %s1300 = int_to_ptr.vmem [resolvable:$true] %s1299
      %1302 = dma.vmem_to_hbm [thread:$0]  %s1300, 128, %s11, [#allocation3]
    $region49: #{tpu_custom_call.1} parent=1 // pred_fallthru
      _
    // Predicated region
    $region50: #{tpu_custom_call.1} parent=1 // pred_check
      _
    $region51: #{tpu_custom_call.1} parent=1 // pred_check_branch
      %1304 = sbr.rel (0) target = $region53
    $region52: #{tpu_custom_call.1} parent=1 // pred_region
      %1305 = dma.done [#allocation3], 128
    $region53: #{tpu_custom_call.1} parent=1 // pred_fallthru
      _
    %1306 = vsyncpa [#allocation3], 1

</llo_original>
